<compile_context>
chip_gen: v7x
topology: tpu7x:2x2x1
jax: 0.10.0
libtpu: 0.0.40
codegen_flags: <defaults>
</compile_context>

<pallas_src>
import functools
import math

import jax
import jax.numpy as jnp
from jax.experimental import pallas as pl
from jax.experimental.pallas import tpu as pltpu


def _round_up(x, m):
    return ((x + m - 1) // m) * m


# ----------------------------------------------------------------------------
# Fused Pallas kernel: pre_conv + n_layers convs + post_conv for one
# (batch, time-tile) grid point.
# ----------------------------------------------------------------------------
def _spec_encoder_kernel(x_hbm, w_pre_ref, b_pre_ref, w_rest_ref, b_rest_ref,
                         o_ref, x_buf, act_a, act_b, dma_sem,
                         *, T, t_tile, halo, n_rest):
    N = t_tile + 2 * halo              # rows held in VMEM for this tile
    M = N - 2                          # rows produced by one 3-tap conv pass
    b = pl.program_id(0)
    t = pl.program_id(1)

    # ---- fetch this tile's input rows (+ halo) straight from HBM -----------
    start = pl.multiple_of(t * t_tile, 8)
    cp = pltpu.make_async_copy(x_hbm.at[b, pl.ds(start, N), :], x_buf, dma_sem)
    cp.start()
    cp.wait()

    # Global time position of every produced row (result row i <-> buffer row
    # i+1 <-> time t*t_tile - halo + 1 + i).  Used to re-apply Conv1d's
    # per-layer zero padding at the true sequence boundaries.
    row = jax.lax.broadcasted_iota(jnp.int32, (M, 1), 0)
    gpos = row + (t * t_tile - halo + 1)
    in_seq = jnp.logical_and(gpos >= 0, gpos < T)

    def conv3(x, w0, w1, w2, bias, *, silu, mask):
        # result[i] = bias + x[i] @ w0 + x[i+1] @ w1 + x[i+2] @ w2
        # (result row i corresponds to buffer row i+1 of the next layer, i.e.
        #  y[p] = b + x[p-1] @ W0 + x[p] @ W1 + x[p+1] @ W2).
        # Activations feed the MXU fully aligned; the shifts hit the f32
        # partial products only.
        acc = jnp.dot(x, w1, preferred_element_type=jnp.float32)[1:1 + M]
        acc = acc + jnp.dot(x, w0, preferred_element_type=jnp.float32)[0:M]
        acc = acc + jnp.dot(x, w2, preferred_element_type=jnp.float32)[2:2 + M]
        acc = acc + bias                              # (1, Cout) broadcast
        if silu:
            acc = acc * jax.nn.sigmoid(acc)
        if mask:
            acc = jnp.where(in_seq, acc, 0.0)
        return acc                                    # (M, Cout) f32

    # layer 0: pre_conv (Cin -> hidden) + SiLU, from the DMA'd input tile.
    y = conv3(x_buf[...], w_pre_ref[0], w_pre_ref[1], w_pre_ref[2],
              b_pre_ref[...], silu=True, mask=True)
    act_a[pl.ds(1, M), :] = y.astype(act_a.dtype)

    # hidden convs + post_conv, ping-ponging between the two VMEM buffers.
    # Rows 0 / N-1 of the ping-pong buffers are never written; they only ever
    # influence rows outside the shrinking exact region [l+1, N-2-l], which the
    # final output slice never touches (halo >= number of stacked layers).
    bufs = (act_a, act_b)
    for l in range(n_rest):
        last = l == n_rest - 1
        src = bufs[l % 2]
        y = conv3(src[...],
                  w_rest_ref[3 * l + 0], w_rest_ref[3 * l + 1],
                  w_rest_ref[3 * l + 2], b_rest_ref[l],
                  silu=not last, mask=not last)
        if last:
            # buffer rows [halo, halo + t_tile) == result rows
            # [halo-1, halo-1+t_tile) are exactly this tile's outputs.
            o_ref[0] = y[halo - 1:halo - 1 + t_tile, :].astype(o_ref.dtype)
        else:
            bufs[(l + 1) % 2][pl.ds(1, M), :] = y.astype(act_a.dtype)


# ----------------------------------------------------------------------------
# Host-side wrapper
# ----------------------------------------------------------------------------
def _pack_params(params, cin_p, h_p):
    """Zero-pad channel dims to lane multiples (128) and cast weights to bf16."""
    w_pre, b_pre = params["pre"]
    cin, h = w_pre.shape[1], w_pre.shape[2]
    wp = jnp.zeros((3, cin_p, h_p), jnp.bfloat16)
    wp = wp.at[:, :cin, :h].set(w_pre.astype(jnp.bfloat16))
    bp = jnp.zeros((1, h_p), jnp.float32).at[0, :h].set(b_pre)

    rest = list(params["convs"]) + [params["post"]]
    n_rest = len(rest)
    wr = jnp.zeros((n_rest, 3, h_p, h_p), jnp.bfloat16)
    br = jnp.zeros((n_rest, 1, h_p), jnp.float32)
    for i, (w, bb) in enumerate(rest):
        wr = wr.at[i, :, :h, :h].set(w.astype(jnp.bfloat16))
        br = br.at[i, 0, :h].set(bb)
    wr = wr.reshape(n_rest * 3, h_p, h_p)
    return wp, bp, wr, br


def spec_encoder_forward(params, lr_spec_nct, *, t_tile=None):
    """lr_spec_nct: (B, Cin, T) like the PyTorch module.  Returns (B, H, T)."""
    B, Cin, T = lr_spec_nct.shape
    H = params["pre"][0].shape[-1]
    n_rest = len(params["convs"]) + 1          # hidden convs + post_conv
    n_total = n_rest + 1                       # + pre_conv
    halo = _round_up(n_total, 8)               # receptive field, sublane aligned
    cin_p = _round_up(Cin, 128)
    h_p = _round_up(H, 128)
    if t_tile is None:
        # biggest multiple-of-8 tile up to 512: bounds VMEM, keeps the output
        # pipeline double-buffered, and gives a second parallel grid axis.
        t_tile = min(_round_up(T, 8), 512)
    num_t = (T + t_tile - 1) // t_tile
    t_pad = num_t * t_tile
    N = t_tile + 2 * halo

    # channels-last, bf16, zero-padded channels + time halo (single host pad).
    x = jnp.transpose(lr_spec_nct, (0, 2, 1)).astype(jnp.bfloat16)
    x_ext = jnp.pad(x, ((0, 0), (halo, halo + t_pad - T), (0, cin_p - Cin)))

    wp, bp, wr, br = _pack_params(params, cin_p, h_p)

    kernel = functools.partial(_spec_encoder_kernel, T=T, t_tile=t_tile,
                               halo=halo, n_rest=n_rest)
    out = pl.pallas_call(
        kernel,
        out_shape=jax.ShapeDtypeStruct((B, t_pad, h_p), jnp.float32),
        grid=(B, num_t),
        in_specs=[
            pl.BlockSpec(memory_space=pl.ANY),                        # x (HBM)
            pl.BlockSpec((3, cin_p, h_p), lambda b, t: (0, 0, 0)),    # pre w
            pl.BlockSpec((1, h_p), lambda b, t: (0, 0)),              # pre b
            pl.BlockSpec((n_rest * 3, h_p, h_p),
                         lambda b, t: (0, 0, 0)),                     # rest w
            pl.BlockSpec((n_rest, 1, h_p), lambda b, t: (0, 0, 0)),   # rest b
        ],
        out_specs=pl.BlockSpec((1, t_tile, h_p), lambda b, t: (b, t, 0)),
        scratch_shapes=[
            pltpu.VMEM((N, cin_p), jnp.bfloat16),   # DMA'd input tile (+halo)
            pltpu.VMEM((N, h_p), jnp.bfloat16),     # ping
            pltpu.VMEM((N, h_p), jnp.bfloat16),     # pong
            pltpu.SemaphoreType.DMA,
        ],
        compiler_params=pltpu.CompilerParams(
            dimension_semantics=("parallel", "parallel"),
            vmem_limit_bytes=32 * 1024 * 1024),
    )(x_ext, wp, bp, wr, br)

    out = out[:, :T, :H]                            # drop time/channel padding
    return jnp.transpose(out, (0, 2, 1)).astype(lr_spec_nct.dtype)


# ----------------------------------------------------------------------------
# Parameters + precision-matched pure-JAX reference
# ----------------------------------------------------------------------------
def init_spec_encoder_params(key, n_layers, hidden_channels, input_channels):
    """Synthetic params.  Weight layout (3, Cin, Cout) is the transpose of
    PyTorch's Conv1d weight (Cout, Cin, 3)."""
    def conv_params(k, cin, cout):
        kw, kb = jax.random.split(k)
        scale = 1.0 / math.sqrt(cin * 3.0)          # ~ PyTorch default init
        w = jax.random.uniform(kw, (3, cin, cout), jnp.float32, -scale, scale)
        bb = jax.random.uniform(kb, (cout,), jnp.float32, -scale, scale)
        return w, bb

    keys = jax.random.split(key, n_layers + 2)
    return {
        "pre": conv_params(keys[0], input_channels, hidden_channels),
        "convs": [conv_params(keys[1 + i], hidden_channels, hidden_channels)
                  for i in range(n_layers)],
        "post": conv_params(keys[-1], hidden_channels, hidden_channels),
    }


def _conv_ref(x_btc, w, b, apply_silu):
    """Reference conv matching the kernel precision: bf16 in, f32 accumulate."""
    T = x_btc.shape[1]
    xb = x_btc.astype(jnp.bfloat16)
    wb = w.astype(jnp.bfloat16)
    xp = jnp.pad(xb, ((0, 0), (1, 1), (0, 0)))
    y = sum(jnp.einsum("btc,cd->btd", xp[:, k:k + T, :], wb[k],
                       preferred_element_type=jnp.float32) for k in range(3))
    y = y + b[None, None, :]
    return y * jax.nn.sigmoid(y) if apply_silu else y


def spec_encoder_ref(params, lr_spec_nct):
    x = jnp.transpose(lr_spec_nct, (0, 2, 1))
    w, b = params["pre"]
    x = _conv_ref(x, w, b, True)
    for (w, b) in params["convs"]:
        x = _conv_ref(x, w, b, True)
    w, b = params["post"]
    x = _conv_ref(x, w, b, False)
    return jnp.transpose(x, (0, 2, 1))


# ----------------------------------------------------------------------------
if __name__ == "__main__":
    key = jax.random.PRNGKey(0)
    k_in, k_par = jax.random.split(key)

    # Small shapes consistent with the module (input_channels shrunk from 513).
    B, INPUT_CHANNELS, T = 2, 32, 16
    HIDDEN, N_LAYERS = 32, 2

    lr_spec = jax.random.normal(k_in, (B, INPUT_CHANNELS, T), jnp.float32)
    params = init_spec_encoder_params(k_par, N_LAYERS, HIDDEN, INPUT_CHANNELS)

    out = spec_encoder_forward(params, lr_spec)
    out = jax.block_until_ready(out)

    ref = spec_encoder_ref(params, lr_spec)
    assert out.shape == (B, HIDDEN, T), out.shape
    err = float(jnp.max(jnp.abs(out - ref)))
    assert err < 5e-2, err   # bf16 matmuls with f32 accumulation

    print("KERNEL_OK")
</pallas_src>

<mosaic_0001>
module attributes {stable_mosaic.version = 11 : i64} {
  func.func @_spec_encoder_kernel(%arg0: i32, %arg1: i32, %arg2: memref<2x32x128xbf16, #tpu.memory_space<any>>, %arg3: memref<3x128x128xbf16, #tpu.memory_space<vmem>>, %arg4: memref<1x128xf32, #tpu.memory_space<vmem>>, %arg5: memref<9x128x128xbf16, #tpu.memory_space<vmem>>, %arg6: memref<3x1x128xf32, #tpu.memory_space<vmem>>, %arg7: memref<1x16x128xf32, #tpu.memory_space<vmem>>, %arg8: memref<32x128xbf16, #tpu.memory_space<vmem>>, %arg9: memref<32x128xbf16, #tpu.memory_space<vmem>>, %arg10: memref<32x128xbf16, #tpu.memory_space<vmem>>, %arg11: memref<!tpu.dma_semaphore, #tpu.memory_space<semaphore_mem>>) attributes {dimension_semantics = [#tpu.dimension_semantics<parallel>, #tpu.dimension_semantics<parallel>], iteration_bounds = array<i64: 2, 1>, scalar_prefetch = 0 : i64, scratch_operands = 4 : i64, tpu.core_type = #tpu.core_type<tc>, window_params = [{}, {pipeline_mode = #tpu.pipeline_mode<synchronous>, transform_indices = @transform_1, window_bounds = array<i64: 3, 128, 128>}, {pipeline_mode = #tpu.pipeline_mode<synchronous>, transform_indices = @transform_2, window_bounds = array<i64: 1, 128>}, {pipeline_mode = #tpu.pipeline_mode<synchronous>, transform_indices = @transform_3, window_bounds = array<i64: 9, 128, 128>}, {pipeline_mode = #tpu.pipeline_mode<synchronous>, transform_indices = @transform_4, window_bounds = array<i64: 3, 1, 128>}, {transform_indices = @transform_5, window_bounds = array<i64: 1, 16, 128>}]} {
    %c16_i32 = arith.constant 16 : i32
    %0 = arith.muli %arg1, %c16_i32 : i32
    %1 = tpu.assume_multiple %0, 8 : i32
    %c0_i32 = arith.constant 0 : i32
    %2 = tpu.memref_slice %arg2[%arg0, %1, %c0_i32] : memref<2x32x128xbf16, #tpu.memory_space<any>> -> memref<1x32x128xbf16, #tpu.memory_space<any>>
    %3 = tpu.memref_squeeze %2 : memref<1x32x128xbf16, #tpu.memory_space<any>> -> memref<32x128xbf16, #tpu.memory_space<any>>
    tpu.enqueue_dma source(%3 : memref<32x128xbf16, #tpu.memory_space<any>>) target(%arg8 : memref<32x128xbf16, #tpu.memory_space<vmem>>) target_semaphore(%arg11 : memref<!tpu.dma_semaphore, #tpu.memory_space<semaphore_mem>>)
    %c0_i32_0 = arith.constant 0 : i32
    %4 = tpu.memref_slice %arg2[%arg0, %1, %c0_i32_0] : memref<2x32x128xbf16, #tpu.memory_space<any>> -> memref<1x32x128xbf16, #tpu.memory_space<any>>
    %5 = tpu.memref_squeeze %4 : memref<1x32x128xbf16, #tpu.memory_space<any>> -> memref<32x128xbf16, #tpu.memory_space<any>>
    tpu.wait_dma2 semaphore(%arg11 : memref<!tpu.dma_semaphore, #tpu.memory_space<semaphore_mem>>) src(%5 : memref<32x128xbf16, #tpu.memory_space<any>>) dst(%arg8 : memref<32x128xbf16, #tpu.memory_space<vmem>>)
    %6 = tpu.iota {dimensions = array<i32: 0>} : vector<30x1xi32>
    %c16_i32_1 = arith.constant 16 : i32
    %7 = arith.muli %arg1, %c16_i32_1 : i32
    %c8_i32 = arith.constant 8 : i32
    %8 = arith.subi %7, %c8_i32 : i32
    %c1_i32 = arith.constant 1 : i32
    %9 = arith.addi %8, %c1_i32 : i32
    %10 = vector.broadcast %9 : i32 to vector<30x1xi32>
    %11 = arith.addi %6, %10 : vector<30x1xi32>
    %c0_i32_2 = arith.constant 0 : i32
    %12 = vector.broadcast %c0_i32_2 : i32 to vector<30x1xi32>
    %13 = arith.cmpi sge, %11, %12 : vector<30x1xi32>
    %c16_i32_3 = arith.constant 16 : i32
    %14 = vector.broadcast %c16_i32_3 : i32 to vector<30x1xi32>
    %15 = arith.cmpi slt, %11, %14 : vector<30x1xi32>
    %16 = arith.andi %13, %15 : vector<30x1xi1>
    %c0 = arith.constant 0 : index
    %c0_4 = arith.constant 0 : index
    %17 = vector.load %arg8[%c0, %c0_4] : memref<32x128xbf16, #tpu.memory_space<vmem>>, vector<32x128xbf16>
    %c0_5 = arith.constant 0 : index
    %c0_6 = arith.constant 0 : index
    %c0_7 = arith.constant 0 : index
    %18 = vector.load %arg3[%c0_5, %c0_6, %c0_7] : memref<3x128x128xbf16, #tpu.memory_space<vmem>>, vector<1x128x128xbf16>
    %19 = vector.shape_cast %18 : vector<1x128x128xbf16> to vector<128x128xbf16>
    %c1 = arith.constant 1 : index
    %c0_8 = arith.constant 0 : index
    %c0_9 = arith.constant 0 : index
    %20 = vector.load %arg3[%c1, %c0_8, %c0_9] : memref<3x128x128xbf16, #tpu.memory_space<vmem>>, vector<1x128x128xbf16>
    %21 = vector.shape_cast %20 : vector<1x128x128xbf16> to vector<128x128xbf16>
    %c2 = arith.constant 2 : index
    %c0_10 = arith.constant 0 : index
    %c0_11 = arith.constant 0 : index
    %22 = vector.load %arg3[%c2, %c0_10, %c0_11] : memref<3x128x128xbf16, #tpu.memory_space<vmem>>, vector<1x128x128xbf16>
    %23 = vector.shape_cast %22 : vector<1x128x128xbf16> to vector<128x128xbf16>
    %c0_12 = arith.constant 0 : index
    %c0_13 = arith.constant 0 : index
    %24 = vector.load %arg4[%c0_12, %c0_13] : memref<1x128xf32, #tpu.memory_space<vmem>>, vector<1x128xf32>
    %cst = arith.constant dense<0.000000e+00> : vector<32x128xf32>
    %25 = tpu.matmul %17, %21, %cst {dimension_numbers = #tpu.dot_dimension_numbers<[1], [0], [0], [1], [0, 0, 1, 1], [], []>} : vector<32x128xbf16>, vector<128x128xbf16>, vector<32x128xf32> -> vector<32x128xf32>
    %26 = vector.extract_strided_slice %25 {offsets = [1, 0], sizes = [30, 128], strides = [1, 1]} : vector<32x128xf32> to vector<30x128xf32>
    %cst_14 = arith.constant dense<0.000000e+00> : vector<32x128xf32>
    %27 = tpu.matmul %17, %19, %cst_14 {dimension_numbers = #tpu.dot_dimension_numbers<[1], [0], [0], [1], [0, 0, 1, 1], [], []>} : vector<32x128xbf16>, vector<128x128xbf16>, vector<32x128xf32> -> vector<32x128xf32>
    %28 = vector.extract_strided_slice %27 {offsets = [0, 0], sizes = [30, 128], strides = [1, 1]} : vector<32x128xf32> to vector<30x128xf32>
    %29 = arith.addf %26, %28 : vector<30x128xf32>
    %cst_15 = arith.constant dense<0.000000e+00> : vector<32x128xf32>
    %30 = tpu.matmul %17, %23, %cst_15 {dimension_numbers = #tpu.dot_dimension_numbers<[1], [0], [0], [1], [0, 0, 1, 1], [], []>} : vector<32x128xbf16>, vector<128x128xbf16>, vector<32x128xf32> -> vector<32x128xf32>
    %31 = vector.extract_strided_slice %30 {offsets = [2, 0], sizes = [30, 128], strides = [1, 1]} : vector<32x128xf32> to vector<30x128xf32>
    %32 = arith.addf %29, %31 : vector<30x128xf32>
    %33 = vector.broadcast %24 : vector<1x128xf32> to vector<30x128xf32>
    %34 = arith.addf %32, %33 : vector<30x128xf32>
    %35 = arith.negf %34 : vector<30x128xf32>
    %36 = math.exp %35 : vector<30x128xf32>
    %cst_16 = arith.constant 1.000000e+00 : f32
    %37 = vector.broadcast %cst_16 : f32 to vector<30x128xf32>
    %38 = arith.addf %37, %36 : vector<30x128xf32>
    %39 = arith.divf %37, %38 : vector<30x128xf32>
    %40 = arith.mulf %34, %39 : vector<30x128xf32>
    %cst_17 = arith.constant 0.000000e+00 : f32
    %41 = vector.shape_cast %16 : vector<30x1xi1> to vector<30x1xi1>
    %42 = vector.broadcast %41 : vector<30x1xi1> to vector<30x128xi1>
    %43 = vector.broadcast %cst_17 : f32 to vector<30x128xf32>
    %44 = arith.select %42, %40, %43 : vector<30x128xi1>, vector<30x128xf32>
    %45 = arith.truncf %44 : vector<30x128xf32> to vector<30x128xbf16>
    %c1_18 = arith.constant 1 : index
    %c0_19 = arith.constant 0 : index
    %46 = vector.load %arg9[%c1_18, %c0_19] : memref<32x128xbf16, #tpu.memory_space<vmem>>, vector<30x128xbf16>
    tpu.vector_store %arg9[%c1_18, %c0_19], %45 {strides = array<i32>} : memref<32x128xbf16, #tpu.memory_space<vmem>>, vector<30x128xbf16>,
    %c0_20 = arith.constant 0 : index
    %c0_21 = arith.constant 0 : index
    %47 = vector.load %arg9[%c0_20, %c0_21] : memref<32x128xbf16, #tpu.memory_space<vmem>>, vector<32x128xbf16>
    %c0_22 = arith.constant 0 : index
    %c0_23 = arith.constant 0 : index
    %c0_24 = arith.constant 0 : index
    %48 = vector.load %arg5[%c0_22, %c0_23, %c0_24] : memref<9x128x128xbf16, #tpu.memory_space<vmem>>, vector<1x128x128xbf16>
    %49 = vector.shape_cast %48 : vector<1x128x128xbf16> to vector<128x128xbf16>
    %c1_25 = arith.constant 1 : index
    %c0_26 = arith.constant 0 : index
    %c0_27 = arith.constant 0 : index
    %50 = vector.load %arg5[%c1_25, %c0_26, %c0_27] : memref<9x128x128xbf16, #tpu.memory_space<vmem>>, vector<1x128x128xbf16>
    %51 = vector.shape_cast %50 : vector<1x128x128xbf16> to vector<128x128xbf16>
    %c2_28 = arith.constant 2 : index
    %c0_29 = arith.constant 0 : index
    %c0_30 = arith.constant 0 : index
    %52 = vector.load %arg5[%c2_28, %c0_29, %c0_30] : memref<9x128x128xbf16, #tpu.memory_space<vmem>>, vector<1x128x128xbf16>
    %53 = vector.shape_cast %52 : vector<1x128x128xbf16> to vector<128x128xbf16>
    %c0_31 = arith.constant 0 : index
    %c0_32 = arith.constant 0 : index
    %c0_33 = arith.constant 0 : index
    %54 = vector.load %arg6[%c0_31, %c0_32, %c0_33] : memref<3x1x128xf32, #tpu.memory_space<vmem>>, vector<1x1x128xf32>
    %55 = vector.shape_cast %54 : vector<1x1x128xf32> to vector<1x128xf32>
    %cst_34 = arith.constant dense<0.000000e+00> : vector<32x128xf32>
    %56 = tpu.matmul %47, %51, %cst_34 {dimension_numbers = #tpu.dot_dimension_numbers<[1], [0], [0], [1], [0, 0, 1, 1], [], []>} : vector<32x128xbf16>, vector<128x128xbf16>, vector<32x128xf32> -> vector<32x128xf32>
    %57 = vector.extract_strided_slice %56 {offsets = [1, 0], sizes = [30, 128], strides = [1, 1]} : vector<32x128xf32> to vector<30x128xf32>
    %cst_35 = arith.constant dense<0.000000e+00> : vector<32x128xf32>
    %58 = tpu.matmul %47, %49, %cst_35 {dimension_numbers = #tpu.dot_dimension_numbers<[1], [0], [0], [1], [0, 0, 1, 1], [], []>} : vector<32x128xbf16>, vector<128x128xbf16>, vector<32x128xf32> -> vector<32x128xf32>
    %59 = vector.extract_strided_slice %58 {offsets = [0, 0], sizes = [30, 128], strides = [1, 1]} : vector<32x128xf32> to vector<30x128xf32>
    %60 = arith.addf %57, %59 : vector<30x128xf32>
    %cst_36 = arith.constant dense<0.000000e+00> : vector<32x128xf32>
    %61 = tpu.matmul %47, %53, %cst_36 {dimension_numbers = #tpu.dot_dimension_numbers<[1], [0], [0], [1], [0, 0, 1, 1], [], []>} : vector<32x128xbf16>, vector<128x128xbf16>, vector<32x128xf32> -> vector<32x128xf32>
    %62 = vector.extract_strided_slice %61 {offsets = [2, 0], sizes = [30, 128], strides = [1, 1]} : vector<32x128xf32> to vector<30x128xf32>
    %63 = arith.addf %60, %62 : vector<30x128xf32>
    %64 = vector.broadcast %55 : vector<1x128xf32> to vector<30x128xf32>
    %65 = arith.addf %63, %64 : vector<30x128xf32>
    %66 = arith.negf %65 : vector<30x128xf32>
    %67 = math.exp %66 : vector<30x128xf32>
    %cst_37 = arith.constant 1.000000e+00 : f32
    %68 = vector.broadcast %cst_37 : f32 to vector<30x128xf32>
    %69 = arith.addf %68, %67 : vector<30x128xf32>
    %70 = arith.divf %68, %69 : vector<30x128xf32>
    %71 = arith.mulf %65, %70 : vector<30x128xf32>
    %cst_38 = arith.constant 0.000000e+00 : f32
    %72 = vector.shape_cast %16 : vector<30x1xi1> to vector<30x1xi1>
    %73 = vector.broadcast %72 : vector<30x1xi1> to vector<30x128xi1>
    %74 = vector.broadcast %cst_38 : f32 to vector<30x128xf32>
    %75 = arith.select %73, %71, %74 : vector<30x128xi1>, vector<30x128xf32>
    %76 = arith.truncf %75 : vector<30x128xf32> to vector<30x128xbf16>
    %c1_39 = arith.constant 1 : index
    %c0_40 = arith.constant 0 : index
    %77 = vector.load %arg10[%c1_39, %c0_40] : memref<32x128xbf16, #tpu.memory_space<vmem>>, vector<30x128xbf16>
    tpu.vector_store %arg10[%c1_39, %c0_40], %76 {strides = array<i32>} : memref<32x128xbf16, #tpu.memory_space<vmem>>, vector<30x128xbf16>,
    %c0_41 = arith.constant 0 : index
    %c0_42 = arith.constant 0 : index
    %78 = vector.load %arg10[%c0_41, %c0_42] : memref<32x128xbf16, #tpu.memory_space<vmem>>, vector<32x128xbf16>
    %c3 = arith.constant 3 : index
    %c0_43 = arith.constant 0 : index
    %c0_44 = arith.constant 0 : index
    %79 = vector.load %arg5[%c3, %c0_43, %c0_44] : memref<9x128x128xbf16, #tpu.memory_space<vmem>>, vector<1x128x128xbf16>
    %80 = vector.shape_cast %79 : vector<1x128x128xbf16> to vector<128x128xbf16>
    %c4 = arith.constant 4 : index
    %c0_45 = arith.constant 0 : index
    %c0_46 = arith.constant 0 : index
    %81 = vector.load %arg5[%c4, %c0_45, %c0_46] : memref<9x128x128xbf16, #tpu.memory_space<vmem>>, vector<1x128x128xbf16>
    %82 = vector.shape_cast %81 : vector<1x128x128xbf16> to vector<128x128xbf16>
    %c5 = arith.constant 5 : index
    %c0_47 = arith.constant 0 : index
    %c0_48 = arith.constant 0 : index
    %83 = vector.load %arg5[%c5, %c0_47, %c0_48] : memref<9x128x128xbf16, #tpu.memory_space<vmem>>, vector<1x128x128xbf16>
    %84 = vector.shape_cast %83 : vector<1x128x128xbf16> to vector<128x128xbf16>
    %c1_49 = arith.constant 1 : index
    %c0_50 = arith.constant 0 : index
    %c0_51 = arith.constant 0 : index
    %85 = vector.load %arg6[%c1_49, %c0_50, %c0_51] : memref<3x1x128xf32, #tpu.memory_space<vmem>>, vector<1x1x128xf32>
    %86 = vector.shape_cast %85 : vector<1x1x128xf32> to vector<1x128xf32>
    %cst_52 = arith.constant dense<0.000000e+00> : vector<32x128xf32>
    %87 = tpu.matmul %78, %82, %cst_52 {dimension_numbers = #tpu.dot_dimension_numbers<[1], [0], [0], [1], [0, 0, 1, 1], [], []>} : vector<32x128xbf16>, vector<128x128xbf16>, vector<32x128xf32> -> vector<32x128xf32>
    %88 = vector.extract_strided_slice %87 {offsets = [1, 0], sizes = [30, 128], strides = [1, 1]} : vector<32x128xf32> to vector<30x128xf32>
    %cst_53 = arith.constant dense<0.000000e+00> : vector<32x128xf32>
    %89 = tpu.matmul %78, %80, %cst_53 {dimension_numbers = #tpu.dot_dimension_numbers<[1], [0], [0], [1], [0, 0, 1, 1], [], []>} : vector<32x128xbf16>, vector<128x128xbf16>, vector<32x128xf32> -> vector<32x128xf32>
    %90 = vector.extract_strided_slice %89 {offsets = [0, 0], sizes = [30, 128], strides = [1, 1]} : vector<32x128xf32> to vector<30x128xf32>
    %91 = arith.addf %88, %90 : vector<30x128xf32>
    %cst_54 = arith.constant dense<0.000000e+00> : vector<32x128xf32>
    %92 = tpu.matmul %78, %84, %cst_54 {dimension_numbers = #tpu.dot_dimension_numbers<[1], [0], [0], [1], [0, 0, 1, 1], [], []>} : vector<32x128xbf16>, vector<128x128xbf16>, vector<32x128xf32> -> vector<32x128xf32>
    %93 = vector.extract_strided_slice %92 {offsets = [2, 0], sizes = [30, 128], strides = [1, 1]} : vector<32x128xf32> to vector<30x128xf32>
    %94 = arith.addf %91, %93 : vector<30x128xf32>
    %95 = vector.broadcast %86 : vector<1x128xf32> to vector<30x128xf32>
    %96 = arith.addf %94, %95 : vector<30x128xf32>
    %97 = arith.negf %96 : vector<30x128xf32>
    %98 = math.exp %97 : vector<30x128xf32>
    %cst_55 = arith.constant 1.000000e+00 : f32
    %99 = vector.broadcast %cst_55 : f32 to vector<30x128xf32>
    %100 = arith.addf %99, %98 : vector<30x128xf32>
    %101 = arith.divf %99, %100 : vector<30x128xf32>
    %102 = arith.mulf %96, %101 : vector<30x128xf32>
    %cst_56 = arith.constant 0.000000e+00 : f32
    %103 = vector.shape_cast %16 : vector<30x1xi1> to vector<30x1xi1>
    %104 = vector.broadcast %103 : vector<30x1xi1> to vector<30x128xi1>
    %105 = vector.broadcast %cst_56 : f32 to vector<30x128xf32>
    %106 = arith.select %104, %102, %105 : vector<30x128xi1>, vector<30x128xf32>
    %107 = arith.truncf %106 : vector<30x128xf32> to vector<30x128xbf16>
    %c1_57 = arith.constant 1 : index
    %c0_58 = arith.constant 0 : index
    %108 = vector.load %arg9[%c1_57, %c0_58] : memref<32x128xbf16, #tpu.memory_space<vmem>>, vector<30x128xbf16>
    tpu.vector_store %arg9[%c1_57, %c0_58], %107 {strides = array<i32>} : memref<32x128xbf16, #tpu.memory_space<vmem>>, vector<30x128xbf16>,
    %c0_59 = arith.constant 0 : index
    %c0_60 = arith.constant 0 : index
    %109 = vector.load %arg9[%c0_59, %c0_60] : memref<32x128xbf16, #tpu.memory_space<vmem>>, vector<32x128xbf16>
    %c6 = arith.constant 6 : index
    %c0_61 = arith.constant 0 : index
    %c0_62 = arith.constant 0 : index
    %110 = vector.load %arg5[%c6, %c0_61, %c0_62] : memref<9x128x128xbf16, #tpu.memory_space<vmem>>, vector<1x128x128xbf16>
    %111 = vector.shape_cast %110 : vector<1x128x128xbf16> to vector<128x128xbf16>
    %c7 = arith.constant 7 : index
    %c0_63 = arith.constant 0 : index
    %c0_64 = arith.constant 0 : index
    %112 = vector.load %arg5[%c7, %c0_63, %c0_64] : memref<9x128x128xbf16, #tpu.memory_space<vmem>>, vector<1x128x128xbf16>
    %113 = vector.shape_cast %112 : vector<1x128x128xbf16> to vector<128x128xbf16>
    %c8 = arith.constant 8 : index
    %c0_65 = arith.constant 0 : index
    %c0_66 = arith.constant 0 : index
    %114 = vector.load %arg5[%c8, %c0_65, %c0_66] : memref<9x128x128xbf16, #tpu.memory_space<vmem>>, vector<1x128x128xbf16>
    %115 = vector.shape_cast %114 : vector<1x128x128xbf16> to vector<128x128xbf16>
    %c2_67 = arith.constant 2 : index
    %c0_68 = arith.constant 0 : index
    %c0_69 = arith.constant 0 : index
    %116 = vector.load %arg6[%c2_67, %c0_68, %c0_69] : memref<3x1x128xf32, #tpu.memory_space<vmem>>, vector<1x1x128xf32>
    %117 = vector.shape_cast %116 : vector<1x1x128xf32> to vector<1x128xf32>
    %cst_70 = arith.constant dense<0.000000e+00> : vector<32x128xf32>
    %118 = tpu.matmul %109, %113, %cst_70 {dimension_numbers = #tpu.dot_dimension_numbers<[1], [0], [0], [1], [0, 0, 1, 1], [], []>} : vector<32x128xbf16>, vector<128x128xbf16>, vector<32x128xf32> -> vector<32x128xf32>
    %119 = vector.extract_strided_slice %118 {offsets = [1, 0], sizes = [30, 128], strides = [1, 1]} : vector<32x128xf32> to vector<30x128xf32>
    %cst_71 = arith.constant dense<0.000000e+00> : vector<32x128xf32>
    %120 = tpu.matmul %109, %111, %cst_71 {dimension_numbers = #tpu.dot_dimension_numbers<[1], [0], [0], [1], [0, 0, 1, 1], [], []>} : vector<32x128xbf16>, vector<128x128xbf16>, vector<32x128xf32> -> vector<32x128xf32>
    %121 = vector.extract_strided_slice %120 {offsets = [0, 0], sizes = [30, 128], strides = [1, 1]} : vector<32x128xf32> to vector<30x128xf32>
    %122 = arith.addf %119, %121 : vector<30x128xf32>
    %cst_72 = arith.constant dense<0.000000e+00> : vector<32x128xf32>
    %123 = tpu.matmul %109, %115, %cst_72 {dimension_numbers = #tpu.dot_dimension_numbers<[1], [0], [0], [1], [0, 0, 1, 1], [], []>} : vector<32x128xbf16>, vector<128x128xbf16>, vector<32x128xf32> -> vector<32x128xf32>
    %124 = vector.extract_strided_slice %123 {offsets = [2, 0], sizes = [30, 128], strides = [1, 1]} : vector<32x128xf32> to vector<30x128xf32>
    %125 = arith.addf %122, %124 : vector<30x128xf32>
    %126 = vector.broadcast %117 : vector<1x128xf32> to vector<30x128xf32>
    %127 = arith.addf %125, %126 : vector<30x128xf32>
    %128 = vector.extract_strided_slice %127 {offsets = [7, 0], sizes = [16, 128], strides = [1, 1]} : vector<30x128xf32> to vector<16x128xf32>
    %c0_73 = arith.constant 0 : index
    %c0_74 = arith.constant 0 : index
    %c0_75 = arith.constant 0 : index
    %129 = vector.load %arg7[%c0_73, %c0_74, %c0_75] : memref<1x16x128xf32, #tpu.memory_space<vmem>>, vector<1x16x128xf32>
    %130 = vector.shape_cast %129 : vector<1x16x128xf32> to vector<16x128xf32>
    %131 = vector.shape_cast %128 : vector<16x128xf32> to vector<1x16x128xf32>
    tpu.vector_store %arg7[%c0_73, %c0_74, %c0_75], %131 {strides = array<i32>} : memref<1x16x128xf32, #tpu.memory_space<vmem>>, vector<1x16x128xf32>,
    return
  }
  func.func @transform_1(%arg0: i32, %arg1: i32) -> (i32, i32, i32) {
    %c0_i32 = arith.constant 0 : i32
    %c0_i32_0 = arith.constant 0 : i32
    %c0_i32_1 = arith.constant 0 : i32
    %c0_i32_2 = arith.constant 0 : i32
    return %c0_i32, %c0_i32_0, %c0_i32_1 : i32, i32, i32
  }
  func.func @transform_2(%arg0: i32, %arg1: i32) -> (i32, i32) {
    %c0_i32 = arith.constant 0 : i32
    %c0_i32_0 = arith.constant 0 : i32
    %c0_i32_1 = arith.constant 0 : i32
    return %c0_i32, %c0_i32_0 : i32, i32
  }
  func.func @transform_3(%arg0: i32, %arg1: i32) -> (i32, i32, i32) {
    %c0_i32 = arith.constant 0 : i32
    %c0_i32_0 = arith.constant 0 : i32
    %c0_i32_1 = arith.constant 0 : i32
    %c0_i32_2 = arith.constant 0 : i32
    return %c0_i32, %c0_i32_0, %c0_i32_1 : i32, i32, i32
  }
  func.func @transform_4(%arg0: i32, %arg1: i32) -> (i32, i32, i32) {
    %c0_i32 = arith.constant 0 : i32
    %c0_i32_0 = arith.constant 0 : i32
    %c0_i32_1 = arith.constant 0 : i32
    %c0_i32_2 = arith.constant 0 : i32
    return %c0_i32, %c0_i32_0, %c0_i32_1 : i32, i32, i32
  }
  func.func @transform_5(%arg0: i32, %arg1: i32) -> (i32, i32, i32) {
    %c0_i32 = arith.constant 0 : i32
    %c0_i32_0 = arith.constant 0 : i32
    return %arg0, %arg1, %c0_i32 : i32, i32, i32
  }
}

</mosaic_0001>

<llo_original>
// kernel: tpu_custom_call.1
$region0: #{tpu_custom_call.1}
  #allocation0 [shape = 'u32[]', space=smem, size = 0x4, offset = 0x4, fixed_abs, tag = 'smem constant byte address 0x4 - core index']
  #allocation1 [shape = 'u32[144,128]{1,0:T(1,128)}', space=vmem, size = 0x12000, scoped, tag = 'internal scratch']
  #allocation2 [shape = 'bf16[32,128]{1,0:T(16,128)(2,1)}', space=vmem, size = 0x2000, scoped, tag = 'scratch operand']
  #allocation3 [shape = 'bf16[32,128]{1,0:T(16,128)(2,1)}', space=vmem, size = 0x2000, scoped, tag = 'scratch operand']
  #allocation4 [shape = 'bf16[32,128]{1,0:T(16,128)(2,1)}', space=vmem, size = 0x2000, scoped, tag = 'scratch operand']
  #allocation5 [shape = 's32[1]{0}', space=sflag, size = 0x4, scoped, tag = 'scratch operand']
  #allocation12 [shape = 's32[]', space=sflag, size = 0x4, offset = 0, fixed_abs, tag = 'sflag constant byte address 0x0 - dummy sync flag']
  #allocation13 [shape = 's32[]', space=sflag, size = 0x4, offset = 0, fixed_abs, tag = 'sflag constant byte address 0x0 - dummy sync flag']
  #allocation14 [shape = 'u32[]', space=smem, size = 0x4, offset = 0x44, fixed_abs, tag = 'smem constant byte address 0x44 - assertion arg 0']
  #allocation15 [shape = 'u32[]', space=smem, size = 0x4, offset = 0x48, fixed_abs, tag = 'smem constant byte address 0x48 - assertion arg 1']
  %s0 = inlined_call_operand.hbm [shape: bf16[2,32,128], index: 0, kind: input, shape index: {}]
  %s1 = inlined_call_operand.hbm [shape: bf16[3,128,128], index: 1, kind: input, shape index: {}]
  %s2 = inlined_call_operand.vmem [shape: f32[1,128], index: 2, kind: input, shape index: {}]
  %s3 = inlined_call_operand.hbm [shape: bf16[9,128,128], index: 3, kind: input, shape index: {}]
  %s4 = inlined_call_operand.vmem [shape: f32[3,1,128], index: 4, kind: input, shape index: {}]
  %s5 = inlined_call_operand.hbm [shape: f32[2,16,128], index: 5, kind: output, shape index: {}]
  %s6 = sld [smem:[#allocation0]]
  $region61: #{tpu_custom_call.1} parent=0
    _
  %s8 = ssub.s32 1, %s6
  %s9 = scalar_select 0, %s8, %s6
  $region1: #{tpu_custom_call.1} parent=0
    #allocation6 [shape = 'u8[98304]{0}', space=vmem, size = 0x18000, scoped, tag = 'input window, operand 1, single buffered']
    #allocation7 [shape = 's32[2]{0}', space=sflag, size = 0x8, scoped, tag = 'scoped memory for tpu_custom_call.1']
    #allocation8 [shape = 's32[2]{0}', space=sflag, size = 0x8, scoped, tag = 'scoped memory for tpu_custom_call.1']
    #allocation9 [shape = 'u8[294912]{0}', space=vmem, size = 0x48000, scoped, tag = 'input window, operand 3, single buffered']
    #allocation10 [shape = 's32[1]{0}', space=sflag, size = 0x4, scoped, tag = 'scoped memory for tpu_custom_call.1']
    #allocation11 [shape = 'u8[16384]{0}', space=vmem, size = 0x4000, scoped, tag = 'output window, operand 0']
    %10 = vsyncpa [#allocation7], 0
    %11 = vsyncpa [#allocation10], 0
    %12 = vsyncpa [#allocation8], 0
    %s13 = scalar_lea.sflag [#allocation8], 1
    %14 = vsyncpa %s13, 0
    loop: start=0, step=1, limit=4
    $region2: #{tpu_custom_call.1} parent=1 // loop_pre_header
      _
    $region3: #{tpu_custom_call.1} parent=1 // loop_header
      %s16 = sphi 0, %s20
      %p17 = scmp.ge.s32.totalorder %s16, 4
      %s23 = sphi 0, %s35
      %s24 = sphi 0, %s31
      %s25 = sphi 0, %s23
      %s26 = sphi 0, %s24
      %s27 = sphi 0, %s25
      %s28 = sphi 0, %s26
      %s36 = sphi 0, %s36
      %s38 = sphi 0, %s36
      %s39 = sphi 0, %s38
      %s53 = sphi 0, %s39
      %s57 = sphi 0, %s57
      %s59 = sphi 0, %s57
      %s60 = sphi 0, %s59
      %s74 = sphi 0, %s60
      %s78 = sphi 0, %s78
      %s80 = sphi 0, %s78
      %s81 = sphi 0, %s80
      %s95 = sphi 0, %s81
      %s99 = sphi 0, %s99
      %s101 = sphi 0, %s99
      %s102 = sphi 0, %s101
      %s116 = sphi 0, %s102
      %s124 = sphi 0, %s126
      %s127 = sphi 0, %s124
      %s128 = sphi 0, %s127
      %s144 = sphi 0, %s128
    $region4: #{tpu_custom_call.1} parent=1 // loop_header_branch
      %19 = sbr.rel (%p17) target = $region8
    $region5: #{tpu_custom_call.1} parent=1 // loop_body
      %s21 = ssub.s32 %s16, 1
      %s22 = ssub.s32 %s16, 2
      %s29 = sadd.s32 1, %s24
      %p30 = scmp.ge.s32.totalorder %s29, 1
      %s31 = scalar_select %p30, 0, %s29
      %s32 = sadd.s32 1, %s23
      %s33 = scalar_select %p30, %s32, %s23
      %p34 = scmp.ge.s32.totalorder %s33, 2
      %s35 = scalar_select %p34, 0, %s33
      %s37 = sadd.s32 %s36, 1
      %p40 = scmp.eq.s32.totalorder %s16, 1
      %p41 = scmp.ne.s32.totalorder %s36, %s38
      %p42 = scmp.eq.s32.totalorder %s16, 0
      %p43 = por %p41, %p42
      %p44 = scmp.ne.s32.totalorder %s36, %s38
      %p45 = scmp.eq.s32.totalorder %s21, 1
      %p46 = por %p44, %p45
      %p47 = scmp.ne.s32.totalorder %s38, %s39
      %p48 = scmp.eq.s32.totalorder %s21, 0
      %p49 = por %p47, %p48
      %p50 = scmp.ne.s32.totalorder %s38, %s39
      %p51 = scmp.eq.s32.totalorder %s22, 1
      %p52 = por %p50, %p51
      %p54 = scmp.ne.s32.totalorder %s39, %s53
      %p55 = scmp.eq.s32.totalorder %s22, 0
      %p56 = por %p54, %p55
      %s58 = sadd.s32 %s57, 1
      %p61 = scmp.eq.s32.totalorder %s16, 1
      %p62 = scmp.ne.s32.totalorder %s57, %s59
      %p63 = scmp.eq.s32.totalorder %s16, 0
      %p64 = por %p62, %p63
      %p65 = scmp.ne.s32.totalorder %s57, %s59
      %p66 = scmp.eq.s32.totalorder %s21, 1
      %p67 = por %p65, %p66
      %p68 = scmp.ne.s32.totalorder %s59, %s60
      %p69 = scmp.eq.s32.totalorder %s21, 0
      %p70 = por %p68, %p69
      %p71 = scmp.ne.s32.totalorder %s59, %s60
      %p72 = scmp.eq.s32.totalorder %s22, 1
      %p73 = por %p71, %p72
      %p75 = scmp.ne.s32.totalorder %s60, %s74
      %p76 = scmp.eq.s32.totalorder %s22, 0
      %p77 = por %p75, %p76
      %s79 = sadd.s32 %s78, 1
      %p82 = scmp.eq.s32.totalorder %s16, 1
      %p83 = scmp.ne.s32.totalorder %s78, %s80
      %p84 = scmp.eq.s32.totalorder %s16, 0
      %p85 = por %p83, %p84
      %p86 = scmp.ne.s32.totalorder %s78, %s80
      %p87 = scmp.eq.s32.totalorder %s21, 1
      %p88 = por %p86, %p87
      %p89 = scmp.ne.s32.totalorder %s80, %s81
      %p90 = scmp.eq.s32.totalorder %s21, 0
      %p91 = por %p89, %p90
      %p92 = scmp.ne.s32.totalorder %s80, %s81
      %p93 = scmp.eq.s32.totalorder %s22, 1
      %p94 = por %p92, %p93
      %p96 = scmp.ne.s32.totalorder %s81, %s95
      %p97 = scmp.eq.s32.totalorder %s22, 0
      %p98 = por %p96, %p97
      %s100 = sadd.s32 %s99, 1
      %p103 = scmp.eq.s32.totalorder %s16, 1
      %p104 = scmp.ne.s32.totalorder %s99, %s101
      %p105 = scmp.eq.s32.totalorder %s16, 0
      %p106 = por %p104, %p105
      %p107 = scmp.ne.s32.totalorder %s99, %s101
      %p108 = scmp.eq.s32.totalorder %s21, 1
      %p109 = por %p107, %p108
      %p110 = scmp.ne.s32.totalorder %s101, %s102
      %p111 = scmp.eq.s32.totalorder %s21, 0
      %p112 = por %p110, %p111
      %p113 = scmp.ne.s32.totalorder %s101, %s102
      %p114 = scmp.eq.s32.totalorder %s22, 1
      %p115 = por %p113, %p114
      %p117 = scmp.ne.s32.totalorder %s102, %s116
      %p118 = scmp.eq.s32.totalorder %s22, 0
      %p119 = por %p117, %p118
      %s120 = ssub.s32 %s23, %s35
      %s121 = ssub.s32 %s24, %s31
      %s122 = sor.u32 %s120, %s121
      %p123 = scmp.eq.s32.totalorder %s122, 0
      %s125 = sadd.s32 %s124, 1
      %s126 = scalar_select %p123, %s124, %s125
      %p129 = pneg %p123
      %p130 = scmp.eq.s32.totalorder %s16, 1
      %p131 = por %p129, %p130
      %p132 = scmp.ne.s32.totalorder %s124, %s127
      %p133 = scmp.eq.s32.totalorder %s16, 0
      %p134 = por %p132, %p133
      %p135 = scmp.ne.s32.totalorder %s124, %s127
      %p136 = scmp.eq.s32.totalorder %s21, 1
      %p137 = por %p135, %p136
      %p138 = scmp.ne.s32.totalorder %s127, %s128
      %p139 = scmp.eq.s32.totalorder %s21, 0
      %p140 = por %p138, %p139
      %p141 = scmp.ne.s32.totalorder %s127, %s128
      %p142 = scmp.eq.s32.totalorder %s22, 1
      %p143 = por %p141, %p142
      %p145 = scmp.ne.s32.totalorder %s128, %s144
      %p146 = scmp.eq.s32.totalorder %s22, 0
      %p147 = por %p145, %p146
      %p148 = scmp.le.s32.totalorder 1, %s16
      %p149 = scmp.lt.s32.totalorder %s16, 3
      %p150 = pnand %p148, %p149
      %p151 = pneg %p150
      // Predicated region
      $region9: #{tpu_custom_call.1} parent=5 // pred_check
        _
      $region10: #{tpu_custom_call.1} parent=5 // pred_check_branch
        %153 = sbr.rel (%p150) target = $region12
      $region11: #{tpu_custom_call.1} parent=5 // pred_region
        %s154 = ssub.s32 %s16, 1
        // Predicated region
        $region13: #{tpu_custom_call.1} parent=11 // pred_check
          %p155 = pneg %p49
        $region14: #{tpu_custom_call.1} parent=11 // pred_check_branch
          %157 = sbr.rel (%p155) target = $region16
        $region15: #{tpu_custom_call.1} parent=11 // pred_region
          %s159 = ssub.s32 3072, 3072
          %160 = vsyncadd [#allocation7], %s159
          %s161 = sshll.u32 [#allocation6], 4
          %s162 = int_to_ptr.vmem [resolvable:$true] %s161
          %167 = dma.hbm_to_vmem [thread:$0]  %s1, 3072, %s162, [#allocation7], 64, 64, 4
        $region16: #{tpu_custom_call.1} parent=11 // pred_fallthru
          _
        // Predicated region
        $region17: #{tpu_custom_call.1} parent=11 // pred_check
          %p168 = pneg %p70
        $region18: #{tpu_custom_call.1} parent=11 // pred_check_branch
          %170 = sbr.rel (%p168) target = $region20
        $region19: #{tpu_custom_call.1} parent=11 // pred_region
          _
        $region20: #{tpu_custom_call.1} parent=11 // pred_fallthru
          _
        // Predicated region
        $region21: #{tpu_custom_call.1} parent=11 // pred_check
          %p171 = pneg %p91
        $region22: #{tpu_custom_call.1} parent=11 // pred_check_branch
          %173 = sbr.rel (%p171) target = $region24
        $region23: #{tpu_custom_call.1} parent=11 // pred_region
          %s175 = ssub.s32 9216, 9216
          %176 = vsyncadd [#allocation10], %s175
          %s177 = sshll.u32 [#allocation9], 4
          %s178 = int_to_ptr.vmem [resolvable:$true] %s177
          %183 = dma.hbm_to_vmem [thread:$0]  %s3, 9216, %s178, [#allocation10], 64, 64, 4
        $region24: #{tpu_custom_call.1} parent=11 // pred_fallthru
          _
        // Predicated region
        $region25: #{tpu_custom_call.1} parent=11 // pred_check
          %p184 = pneg %p112
        $region26: #{tpu_custom_call.1} parent=11 // pred_check_branch
          %186 = sbr.rel (%p184) target = $region28
        $region27: #{tpu_custom_call.1} parent=11 // pred_region
          _
        $region28: #{tpu_custom_call.1} parent=11 // pred_fallthru
          _
      $region12: #{tpu_custom_call.1} parent=5 // pred_fallthru
        _
      %p187 = scmp.lt.s32.totalorder %s16, 2
      // Predicated region
      $region29: #{tpu_custom_call.1} parent=5 // pred_check
        %p188 = pneg %p187
      $region30: #{tpu_custom_call.1} parent=5 // pred_check_branch
        %190 = sbr.rel (%p188) target = $region32
      $region31: #{tpu_custom_call.1} parent=5 // pred_region
        _
      $region32: #{tpu_custom_call.1} parent=5 // pred_fallthru
        _
      %p191 = scmp.le.s32.totalorder 1, %s16
      %p192 = scmp.lt.s32.totalorder %s16, 3
      %p193 = pnand %p191, %p192
      %p194 = pneg %p193
      // Predicated region
      $region33: #{tpu_custom_call.1} parent=5 // pred_check
        _
      $region34: #{tpu_custom_call.1} parent=5 // pred_check_branch
        %196 = sbr.rel (%p193) target = $region36
      $region35: #{tpu_custom_call.1} parent=5 // pred_region
        %s197 = ssub.s32 %s16, 1
        // Predicated region
        $region37: #{tpu_custom_call.1} parent=35 // pred_check
          %p198 = pneg %p49
        $region38: #{tpu_custom_call.1} parent=35 // pred_check_branch
          %200 = sbr.rel (%p198) target = $region40
        $region39: #{tpu_custom_call.1} parent=35 // pred_region
          %201 = dma.done [#allocation7], 3072
        $region40: #{tpu_custom_call.1} parent=35 // pred_fallthru
          _
        // Predicated region
        $region41: #{tpu_custom_call.1} parent=35 // pred_check
          %p202 = pneg %p91
        $region42: #{tpu_custom_call.1} parent=35 // pred_check_branch
          %204 = sbr.rel (%p202) target = $region44
        $region43: #{tpu_custom_call.1} parent=35 // pred_region
          %205 = dma.done [#allocation10], 9216
        $region44: #{tpu_custom_call.1} parent=35 // pred_fallthru
          _
        %p206 = pneg %p49
        %p207 = pneg %p46
        %p208 = pneg %p70
        %p209 = pneg %p67
        %p210 = pneg %p91
        %p211 = pneg %p88
        %p212 = pneg %p112
        %p213 = pneg %p109
        %p214 = pneg %p140
        %p215 = pneg %p137
        %s216 = sand.u32 %s127, 1
        %s217 = scalar_lea.sflag [#allocation8], %s216
        %s218 = sand.u32 %s127, 1
        %s219 = smul.addr %s218, 16
        %s220 = scalar_lea.vmem [#allocation11], %s219
        %s221 = smul.u32 2, %s26
        %s223 = smul.u32 %s26, 16
        %s224 = sshra.s32 %s223, 3
        %s225 = sand.u32 %s223, 7
        %s226 = smul.u32 %s25, 4
        %s227 = sadd.s32 %s224, %s226
        %s228 = smul.addr %s227, 64
        %s229 = scalar_lea.hbm %s0, %s228
        // Predicated region
        $region45: #{tpu_custom_call.1} parent=35 // pred_check
          _
        $region46: #{tpu_custom_call.1} parent=35 // pred_check_branch
          %231 = sbr.rel target = $region48
        $region47: #{tpu_custom_call.1} parent=35 // pred_region
          %232 = sst [smem:[#allocation14]] [#allocation13]
          %233 = sst [smem:[#allocation15]] [#allocation12]
        $region48: #{tpu_custom_call.1} parent=35 // pred_fallthru
          _
        %235 = shalt.err (0)
        %s237 = sshll.u32 [#allocation2], 4
        %s238 = int_to_ptr.vmem [resolvable:$true] %s237
        %240 = dma.hbm_to_vmem [thread:$0]  %s229, 256, %s238, [#allocation5]
        %s241 = smul.u32 4, 4
        %s242 = smul.u32 %s241, 1
        %s243 = sshll.u32 %s242, 4
        %244 = dma.done [#allocation5], %s243
        %v245 = vlaneseq
        %v246 = vshrl.u32 %v245, 7
        %v247 = vadd.s32 %v246, 8
        %v248 = vadd.s32 %v246, 16
        %v249 = vadd.s32 %v246, 24
        %s250 = sadd.s32 %s223, 4294967289
        %v251 = vstv %s250
        %v252 = vadd.s32 %v246, %v251
        %v253 = vadd.s32 %v247, %v251
        %v254 = vadd.s32 %v248, %v251
        %v255 = vadd.s32 %v249, %v251
        %vm256 = vcmp.ge.s32.totalorder %v252, 0
        %vm257 = vcmp.ge.s32.totalorder %v253, 0
        %vm258 = vcmp.ge.s32.totalorder %v254, 0
        %vm259 = vcmp.ge.s32.totalorder %v255, 0
        %vm260 = vcmp.lt.s32.totalorder %v252, 16
        %vm261 = vcmp.lt.s32.totalorder %v253, 16
        %vm262 = vcmp.lt.s32.totalorder %v254, 16
        %vm263 = vcmp.lt.s32.totalorder %v255, 16
        %vm264 = vmand %vm256, %vm260
        %vm265 = vmand %vm257, %vm261
        %vm266 = vmand %vm258, %vm262
        %vm267 = vmand %vm259, %vm263
        %v268 = vld [vmem:[#allocation2] sm:$0xff]
        %v269 = vld [vmem:[#allocation2 + $0x8] sm:$0xff]
        %v270 = vld [vmem:[#allocation6] sm:$0xf]
        %v271 = vld [vmem:[#allocation6 + $0x4] sm:$0xf]
        %v272 = vld [vmem:[#allocation6 + $0x8] sm:$0xf]
        %v273 = vld [vmem:[#allocation6 + $0xc] sm:$0xf]
        %v274 = vld [vmem:[#allocation6 + $0x10] sm:$0xf]
        %v275 = vld [vmem:[#allocation6 + $0x14] sm:$0xf]
        %v276 = vld [vmem:[#allocation6 + $0x18] sm:$0xf]
        %v277 = vld [vmem:[#allocation6 + $0x1c] sm:$0xf]
        %v278 = vld [vmem:[#allocation6 + $0x20] sm:$0xf]
        %v279 = vld [vmem:[#allocation6 + $0x24] sm:$0xf]
        %v280 = vld [vmem:[#allocation6 + $0x28] sm:$0xf]
        %v281 = vld [vmem:[#allocation6 + $0x2c] sm:$0xf]
        %v282 = vld [vmem:[#allocation6 + $0x30] sm:$0xf]
        %v283 = vld [vmem:[#allocation6 + $0x34] sm:$0xf]
        %v284 = vld [vmem:[#allocation6 + $0x38] sm:$0xf]
        %v285 = vld [vmem:[#allocation6 + $0x3c] sm:$0xf]
        %s286 = scalar_lea.vmem [#allocation6], 64
        %v287 = vld [vmem:[%s286] sm:$0xf]
        %v288 = vld [vmem:[%s286 + $0x4] sm:$0xf]
        %v289 = vld [vmem:[%s286 + $0x8] sm:$0xf]
        %v290 = vld [vmem:[%s286 + $0xc] sm:$0xf]
        %v291 = vld [vmem:[%s286 + $0x10] sm:$0xf]
        %v292 = vld [vmem:[%s286 + $0x14] sm:$0xf]
        %v293 = vld [vmem:[%s286 + $0x18] sm:$0xf]
        %v294 = vld [vmem:[%s286 + $0x1c] sm:$0xf]
        %v295 = vld [vmem:[%s286 + $0x20] sm:$0xf]
        %v296 = vld [vmem:[%s286 + $0x24] sm:$0xf]
        %v297 = vld [vmem:[%s286 + $0x28] sm:$0xf]
        %v298 = vld [vmem:[%s286 + $0x2c] sm:$0xf]
        %v299 = vld [vmem:[%s286 + $0x30] sm:$0xf]
        %v300 = vld [vmem:[%s286 + $0x34] sm:$0xf]
        %v301 = vld [vmem:[%s286 + $0x38] sm:$0xf]
        %v302 = vld [vmem:[%s286 + $0x3c] sm:$0xf]
        %s303 = scalar_lea.vmem [#allocation6], 128
        %v304 = vld [vmem:[%s303] sm:$0xf]
        %v305 = vld [vmem:[%s303 + $0x4] sm:$0xf]
        %v306 = vld [vmem:[%s303 + $0x8] sm:$0xf]
        %v307 = vld [vmem:[%s303 + $0xc] sm:$0xf]
        %v308 = vld [vmem:[%s303 + $0x10] sm:$0xf]
        %v309 = vld [vmem:[%s303 + $0x14] sm:$0xf]
        %v310 = vld [vmem:[%s303 + $0x18] sm:$0xf]
        %v311 = vld [vmem:[%s303 + $0x1c] sm:$0xf]
        %v312 = vld [vmem:[%s303 + $0x20] sm:$0xf]
        %v313 = vld [vmem:[%s303 + $0x24] sm:$0xf]
        %v314 = vld [vmem:[%s303 + $0x28] sm:$0xf]
        %v315 = vld [vmem:[%s303 + $0x2c] sm:$0xf]
        %v316 = vld [vmem:[%s303 + $0x30] sm:$0xf]
        %v317 = vld [vmem:[%s303 + $0x34] sm:$0xf]
        %v318 = vld [vmem:[%s303 + $0x38] sm:$0xf]
        %v319 = vld [vmem:[%s303 + $0x3c] sm:$0xf]
        %v320 = vld [vmem:[%s2] sm:$0x1]
        %v337 = vunpack.c.l.b16 %v287
        %v338 = vunpack.c.l.b16 %v288
        %v339 = vunpack.c.l.b16 %v289
        %v340 = vunpack.c.l.b16 %v290
        %v341 = vunpack.c.l.b16 %v291
        %v342 = vunpack.c.l.b16 %v292
        %v343 = vunpack.c.l.b16 %v293
        %v344 = vunpack.c.l.b16 %v294
        %v345 = vunpack.c.l.b16 %v295
        %v346 = vunpack.c.l.b16 %v296
        %v347 = vunpack.c.l.b16 %v297
        %v348 = vunpack.c.l.b16 %v298
        %v349 = vunpack.c.l.b16 %v299
        %v350 = vunpack.c.l.b16 %v300
        %v351 = vunpack.c.l.b16 %v301
        %v352 = vunpack.c.l.b16 %v302
        %v353 = vpack.c.b16 %v338, %v337
        %v354 = vpack.c.b16 %v340, %v339
        %v355 = vpack.c.b16 %v342, %v341
        %v356 = vpack.c.b16 %v344, %v343
        %v357 = vpack.c.b16 %v346, %v345
        %v358 = vpack.c.b16 %v348, %v347
        %v359 = vpack.c.b16 %v350, %v349
        %v360 = vpack.c.b16 %v352, %v351
        %369 = vmatprep.subr.bf16.mxu0 0
        %370 = vmatpush1.bf16.msra.mxu0 %v353
        %371 = vmatprep.subr.bf16.mxu0 0
        %372 = vmatpush1.bf16.msra.mxu0 %v354
        %373 = vmatprep.subr.bf16.mxu0 0
        %374 = vmatpush1.bf16.msra.mxu0 %v355
        %375 = vmatprep.subr.bf16.mxu0 0
        %376 = vmatpush1.bf16.msra.mxu0 %v356
        %377 = vmatprep.subr.bf16.mxu0 0
        %378 = vmatpush1.bf16.msra.mxu0 %v357
        %379 = vmatprep.subr.bf16.mxu0 0
        %380 = vmatpush1.bf16.msra.mxu0 %v358
        %381 = vmatprep.subr.bf16.mxu0 0
        %382 = vmatpush1.bf16.msra.mxu0 %v359
        %383 = vmatprep.subr.bf16.mxu0 0
        %384 = vmatpush1.bf16.msra.mxu0 %v360
        %385 = vmatprep.subr.bf16.mxu0 0
        %386 = vmatpush1.bf16.msra.mxu0 0
        %387 = vmatprep.subr.bf16.mxu0 0
        %388 = vmatpush1.bf16.msra.mxu0 0
        %389 = vmatprep.subr.bf16.mxu0 0
        %390 = vmatpush1.bf16.msra.mxu0 0
        %391 = vmatprep.subr.bf16.mxu0 0
        %392 = vmatpush1.bf16.msra.mxu0 0
        %393 = vmatprep.subr.bf16.mxu0 0
        %394 = vmatpush1.bf16.msra.mxu0 0
        %395 = vmatprep.subr.bf16.mxu0 0
        %396 = vmatpush1.bf16.msra.mxu0 0
        %397 = vmatprep.subr.bf16.mxu0 0
        %398 = vmatpush1.bf16.msra.mxu0 0
        %399 = vmatprep.subr.bf16.mxu0 0
        %400 = vmatpush1.bf16.msra.mxu0 0
        %401 = vmatprep.mubr.bf16.mxu0 0
        %402 = vmatmul.mubr.bf16.gmra.mrb[0].mxu0 %v268
        %v403 = vpop.f32.mrb[0].mxu0
        %v404 = vadd.f32 0.0, %v403
        %v405 = vpop.f32.mrb[0].mxu0
        %v406 = vpop.f32.mrb[0].mxu0
        %v407 = vadd.f32 0.0, %v406
        %v408 = vpop.f32.mrb[0].mxu0
        %409 = vmatprep.mubr.bf16.mxu0 0
        %410 = vmatmul.mubr.bf16.gmra.mrb[0].mxu0 %v269
        %v411 = vpop.f32.mrb[0].mxu0
        %v412 = vadd.f32 0.0, %v411
        %v413 = vpop.f32.mrb[0].mxu0
        %v414 = vpop.f32.mrb[0].mxu0
        %v415 = vadd.f32 0.0, %v414
        %v416 = vpop.f32.mrb[0].mxu0
        %417 = vdwg.mxu0
        %v434 = vunpack.c.l.b16 %v270
        %v435 = vunpack.c.l.b16 %v271
        %v436 = vunpack.c.l.b16 %v272
        %v437 = vunpack.c.l.b16 %v273
        %v438 = vunpack.c.l.b16 %v274
        %v439 = vunpack.c.l.b16 %v275
        %v440 = vunpack.c.l.b16 %v276
        %v441 = vunpack.c.l.b16 %v277
        %v442 = vunpack.c.l.b16 %v278
        %v443 = vunpack.c.l.b16 %v279
        %v444 = vunpack.c.l.b16 %v280
        %v445 = vunpack.c.l.b16 %v281
        %v446 = vunpack.c.l.b16 %v282
        %v447 = vunpack.c.l.b16 %v283
        %v448 = vunpack.c.l.b16 %v284
        %v449 = vunpack.c.l.b16 %v285
        %v450 = vpack.c.b16 %v435, %v434
        %v451 = vpack.c.b16 %v437, %v436
        %v452 = vpack.c.b16 %v439, %v438
        %v453 = vpack.c.b16 %v441, %v440
        %v454 = vpack.c.b16 %v443, %v442
        %v455 = vpack.c.b16 %v445, %v444
        %v456 = vpack.c.b16 %v447, %v446
        %v457 = vpack.c.b16 %v449, %v448
        %466 = vmatprep.subr.bf16.mxu0 0
        %467 = vmatpush1.bf16.msra.mxu0 %v450
        %468 = vmatprep.subr.bf16.mxu0 0
        %469 = vmatpush1.bf16.msra.mxu0 %v451
        %470 = vmatprep.subr.bf16.mxu0 0
        %471 = vmatpush1.bf16.msra.mxu0 %v452
        %472 = vmatprep.subr.bf16.mxu0 0
        %473 = vmatpush1.bf16.msra.mxu0 %v453
        %474 = vmatprep.subr.bf16.mxu0 0
        %475 = vmatpush1.bf16.msra.mxu0 %v454
        %476 = vmatprep.subr.bf16.mxu0 0
        %477 = vmatpush1.bf16.msra.mxu0 %v455
        %478 = vmatprep.subr.bf16.mxu0 0
        %479 = vmatpush1.bf16.msra.mxu0 %v456
        %480 = vmatprep.subr.bf16.mxu0 0
        %481 = vmatpush1.bf16.msra.mxu0 %v457
        %482 = vmatprep.subr.bf16.mxu0 0
        %483 = vmatpush1.bf16.msra.mxu0 0
        %484 = vmatprep.subr.bf16.mxu0 0
        %485 = vmatpush1.bf16.msra.mxu0 0
        %486 = vmatprep.subr.bf16.mxu0 0
        %487 = vmatpush1.bf16.msra.mxu0 0
        %488 = vmatprep.subr.bf16.mxu0 0
        %489 = vmatpush1.bf16.msra.mxu0 0
        %490 = vmatprep.subr.bf16.mxu0 0
        %491 = vmatpush1.bf16.msra.mxu0 0
        %492 = vmatprep.subr.bf16.mxu0 0
        %493 = vmatpush1.bf16.msra.mxu0 0
        %494 = vmatprep.subr.bf16.mxu0 0
        %495 = vmatpush1.bf16.msra.mxu0 0
        %496 = vmatprep.subr.bf16.mxu0 0
        %497 = vmatpush1.bf16.msra.mxu0 0
        %498 = vmatprep.mubr.bf16.mxu0 0
        %499 = vmatmul.mubr.bf16.gmra.mrb[0].mxu0 %v268
        %v500 = vpop.f32.mrb[0].mxu0
        %v501 = vadd.f32 0.0, %v500
        %v502 = vpop.f32.mrb[0].mxu0
        %v503 = vpop.f32.mrb[0].mxu0
        %v504 = vadd.f32 0.0, %v503
        %v505 = vpop.f32.mrb[0].mxu0
        %506 = vmatprep.mubr.bf16.mxu0 0
        %507 = vmatmul.mubr.bf16.gmra.mrb[0].mxu0 %v269
        %v508 = vpop.f32.mrb[0].mxu0
        %v509 = vadd.f32 0.0, %v508
        %v510 = vpop.f32.mrb[0].mxu0
        %v511 = vpop.f32.mrb[0].mxu0
        %v512 = vadd.f32 0.0, %v511
        %v513 = vpop.f32.mrb[0].mxu0
        %514 = vdwg.mxu0
        %vm519 = vcmask 1040384
        %v520 = vrot.slane %v501, 7
        %v521 = vrot.slane %v504, 7
        %v522 = vsel %vm519, %v520, %v521
        %v523 = vrot.slane %v509, 7
        %v524 = vsel %vm519, %v521, %v523
        %v525 = vrot.slane %v512, 7
        %v526 = vsel %vm519, %v523, %v525
        %v531 = vadd.f32 %v404, %v520
        %v532 = vadd.f32 %v407, %v522
        %v533 = vadd.f32 %v412, %v524
        %v534 = vadd.f32 %v415, %v526
        %v551 = vunpack.c.l.b16 %v304
        %v552 = vunpack.c.l.b16 %v305
        %v553 = vunpack.c.l.b16 %v306
        %v554 = vunpack.c.l.b16 %v307
        %v555 = vunpack.c.l.b16 %v308
        %v556 = vunpack.c.l.b16 %v309
        %v557 = vunpack.c.l.b16 %v310
        %v558 = vunpack.c.l.b16 %v311
        %v559 = vunpack.c.l.b16 %v312
        %v560 = vunpack.c.l.b16 %v313
        %v561 = vunpack.c.l.b16 %v314
        %v562 = vunpack.c.l.b16 %v315
        %v563 = vunpack.c.l.b16 %v316
        %v564 = vunpack.c.l.b16 %v317
        %v565 = vunpack.c.l.b16 %v318
        %v566 = vunpack.c.l.b16 %v319
        %v567 = vpack.c.b16 %v552, %v551
        %v568 = vpack.c.b16 %v554, %v553
        %v569 = vpack.c.b16 %v556, %v555
        %v570 = vpack.c.b16 %v558, %v557
        %v571 = vpack.c.b16 %v560, %v559
        %v572 = vpack.c.b16 %v562, %v561
        %v573 = vpack.c.b16 %v564, %v563
        %v574 = vpack.c.b16 %v566, %v565
        %583 = vmatprep.subr.bf16.mxu0 0
        %584 = vmatpush1.bf16.msra.mxu0 %v567
        %585 = vmatprep.subr.bf16.mxu0 0
        %586 = vmatpush1.bf16.msra.mxu0 %v568
        %587 = vmatprep.subr.bf16.mxu0 0
        %588 = vmatpush1.bf16.msra.mxu0 %v569
        %589 = vmatprep.subr.bf16.mxu0 0
        %590 = vmatpush1.bf16.msra.mxu0 %v570
        %591 = vmatprep.subr.bf16.mxu0 0
        %592 = vmatpush1.bf16.msra.mxu0 %v571
        %593 = vmatprep.subr.bf16.mxu0 0
        %594 = vmatpush1.bf16.msra.mxu0 %v572
        %595 = vmatprep.subr.bf16.mxu0 0
        %596 = vmatpush1.bf16.msra.mxu0 %v573
        %597 = vmatprep.subr.bf16.mxu0 0
        %598 = vmatpush1.bf16.msra.mxu0 %v574
        %599 = vmatprep.subr.bf16.mxu0 0
        %600 = vmatpush1.bf16.msra.mxu0 0
        %601 = vmatprep.subr.bf16.mxu0 0
        %602 = vmatpush1.bf16.msra.mxu0 0
        %603 = vmatprep.subr.bf16.mxu0 0
        %604 = vmatpush1.bf16.msra.mxu0 0
        %605 = vmatprep.subr.bf16.mxu0 0
        %606 = vmatpush1.bf16.msra.mxu0 0
        %607 = vmatprep.subr.bf16.mxu0 0
        %608 = vmatpush1.bf16.msra.mxu0 0
        %609 = vmatprep.subr.bf16.mxu0 0
        %610 = vmatpush1.bf16.msra.mxu0 0
        %611 = vmatprep.subr.bf16.mxu0 0
        %612 = vmatpush1.bf16.msra.mxu0 0
        %613 = vmatprep.subr.bf16.mxu0 0
        %614 = vmatpush1.bf16.msra.mxu0 0
        %615 = vmatprep.mubr.bf16.mxu0 0
        %616 = vmatmul.mubr.bf16.gmra.mrb[0].mxu0 %v268
        %v617 = vpop.f32.mrb[0].mxu0
        %v618 = vadd.f32 0.0, %v617
        %v619 = vpop.f32.mrb[0].mxu0
        %v620 = vpop.f32.mrb[0].mxu0
        %v621 = vadd.f32 0.0, %v620
        %v622 = vpop.f32.mrb[0].mxu0
        %623 = vmatprep.mubr.bf16.mxu0 0
        %624 = vmatmul.mubr.bf16.gmra.mrb[0].mxu0 %v269
        %v625 = vpop.f32.mrb[0].mxu0
        %v626 = vadd.f32 0.0, %v625
        %v627 = vpop.f32.mrb[0].mxu0
        %v628 = vpop.f32.mrb[0].mxu0
        %v629 = vadd.f32 0.0, %v628
        %v630 = vpop.f32.mrb[0].mxu0
        %631 = vdwg.mxu0
        %vm636 = vcmask 1046528
        %v637 = vrot.slane %v618, 1
        %v638 = vrot.slane %v621, 1
        %v639 = vsel %vm636, %v637, %v638
        %v640 = vrot.slane %v626, 1
        %v641 = vsel %vm636, %v638, %v640
        %v642 = vrot.slane %v629, 1
        %v643 = vsel %vm636, %v640, %v642
        %v648 = vadd.f32 %v531, %v639
        %v649 = vadd.f32 %v532, %v641
        %v650 = vadd.f32 %v533, %v643
        %v651 = vadd.f32 %v534, %v642
        %v653 = vlaneseq
        %v654 = vshrl.u32 %v653, 7
        %v655 = vsub.s32 0, %v654
        %v656 = vrot.slane %v320, %v655
        %v658 = vadd.f32 %v648, %v656
        %v659 = vadd.f32 %v649, %v656
        %v660 = vadd.f32 %v650, %v656
        %v661 = vadd.f32 %v651, %v656
        %v662 = vxor.u32 %v658, 2147483648
        %v663 = vxor.u32 %v659, 2147483648
        %v664 = vxor.u32 %v660, 2147483648
        %v665 = vxor.u32 %v661, 2147483648
        %v666 = vmul.f32 %v662, 1.442695
        %v667 = vpow.pop %v666
        %v668 = vmul.f32 %v663, 1.442695
        %v669 = vpow.pop %v668
        %v670 = vmul.f32 %v664, 1.442695
        %v671 = vpow.pop %v670
        %v672 = vmul.f32 %v665, 1.442695
        %v673 = vpow.pop %v672
        %v674 = vadd.f32 %v667, 1.0
        %v675 = vadd.f32 %v669, 1.0
        %v676 = vadd.f32 %v671, 1.0
        %v677 = vadd.f32 %v673, 1.0
        %v678 = vrcp.pop %v674
        %v679 = vmul.f32 1.0, %v678
        %v680 = vrcp.pop %v675
        %v681 = vmul.f32 1.0, %v680
        %v682 = vrcp.pop %v676
        %v683 = vmul.f32 1.0, %v682
        %v684 = vrcp.pop %v677
        %v685 = vmul.f32 1.0, %v684
        %v686 = vmul.f32 %v658, %v679
        %v687 = vmul.f32 %v659, %v681
        %v688 = vmul.f32 %v660, %v683
        %v689 = vmul.f32 %v661, %v685
        %v690 = vsel %vm264, 1, 0
        %v691 = vsel %vm265, 1, 0
        %v692 = vsel %vm266, 1, 0
        %v693 = vsel %vm267, 1, 0
        %vm694 = vcmp.eq.s32.totalorder %v690, 1
        %vm695 = vcmp.eq.s32.totalorder %v691, 1
        %vm696 = vcmp.eq.s32.totalorder %v692, 1
        %vm697 = vcmp.eq.s32.totalorder %v693, 1
        %v702 = vrot.slane %v686, 1
        %v703 = vrot.slane %v687, 1
        %v704 = vsel %vm636, %v702, %v703
        %v705 = vrot.slane %v688, 1
        %v706 = vsel %vm636, %v703, %v705
        %v707 = vrot.slane %v689, 1
        %v708 = vsel %vm636, %v705, %v707
        %v713 = vsel %vm694, %v704, 0.0
        %v714 = vsel %vm695, %v706, 0.0
        %v715 = vsel %vm696, %v708, 0.0
        %v716 = vsel %vm697, %v707, 0.0
        %v717 = vpack.c.bf16 %v714, %v713
        %v718 = vpack.c.bf16 %v716, %v715
        %vm719 = vsmask.f32 256
        %v721 = vshrl.u32 %v717, 16
        %v723 = vrot.slane %v721, 7
        %v724 = vshll.u32 %v717, 16
        %v726 = vor.u32 %v723, %v724
        %v728 = vshrl.u32 %v718, 16
        %v730 = vrot.slane %v728, 7
        %v731 = vshll.u32 %v718, 16
        %v733 = vor.u32 %v730, %v731
        %v734 = vsel %vm719, %v723, %v733
        %vm737 = vcmask 1047552
        %vm738 = vsmask.f32 7938
        %vm739 = vmand %vm737, %vm738
        %v740 = vld [vmem:[#allocation3] sm:$0xff]
        %v741 = vsel %vm739, %v726, %v740
        %742 = vst [vmem:[#allocation3] sm:$0xff] %v741
        %vm743 = vsmask.f32 7424
        %vm744 = vmand %vm737, %vm743
        %v745 = vld [vmem:[#allocation3 + $0x8] sm:$0xff]
        %v746 = vsel %vm744, %v734, %v745
        %747 = vst [vmem:[#allocation3 + $0x8] sm:$0xff] %v746
        %v748 = vld [vmem:[#allocation3] sm:$0xff]
        %v749 = vld [vmem:[#allocation3 + $0x8] sm:$0xff]
        %v750 = vld [vmem:[#allocation9] sm:$0xf]
        %v751 = vld [vmem:[#allocation9 + $0x4] sm:$0xf]
        %v752 = vld [vmem:[#allocation9 + $0x8] sm:$0xf]
        %v753 = vld [vmem:[#allocation9 + $0xc] sm:$0xf]
        %v754 = vld [vmem:[#allocation9 + $0x10] sm:$0xf]
        %v755 = vld [vmem:[#allocation9 + $0x14] sm:$0xf]
        %v756 = vld [vmem:[#allocation9 + $0x18] sm:$0xf]
        %v757 = vld [vmem:[#allocation9 + $0x1c] sm:$0xf]
        %v758 = vld [vmem:[#allocation9 + $0x20] sm:$0xf]
        %v759 = vld [vmem:[#allocation9 + $0x24] sm:$0xf]
        %v760 = vld [vmem:[#allocation9 + $0x28] sm:$0xf]
        %v761 = vld [vmem:[#allocation9 + $0x2c] sm:$0xf]
        %v762 = vld [vmem:[#allocation9 + $0x30] sm:$0xf]
        %v763 = vld [vmem:[#allocation9 + $0x34] sm:$0xf]
        %v764 = vld [vmem:[#allocation9 + $0x38] sm:$0xf]
        %v765 = vld [vmem:[#allocation9 + $0x3c] sm:$0xf]
        %s766 = scalar_lea.vmem [#allocation9], 64
        %v767 = vld [vmem:[%s766] sm:$0xf]
        %v768 = vld [vmem:[%s766 + $0x4] sm:$0xf]
        %v769 = vld [vmem:[%s766 + $0x8] sm:$0xf]
        %v770 = vld [vmem:[%s766 + $0xc] sm:$0xf]
        %v771 = vld [vmem:[%s766 + $0x10] sm:$0xf]
        %v772 = vld [vmem:[%s766 + $0x14] sm:$0xf]
        %v773 = vld [vmem:[%s766 + $0x18] sm:$0xf]
        %v774 = vld [vmem:[%s766 + $0x1c] sm:$0xf]
        %v775 = vld [vmem:[%s766 + $0x20] sm:$0xf]
        %v776 = vld [vmem:[%s766 + $0x24] sm:$0xf]
        %v777 = vld [vmem:[%s766 + $0x28] sm:$0xf]
        %v778 = vld [vmem:[%s766 + $0x2c] sm:$0xf]
        %v779 = vld [vmem:[%s766 + $0x30] sm:$0xf]
        %v780 = vld [vmem:[%s766 + $0x34] sm:$0xf]
        %v781 = vld [vmem:[%s766 + $0x38] sm:$0xf]
        %v782 = vld [vmem:[%s766 + $0x3c] sm:$0xf]
        %s783 = scalar_lea.vmem [#allocation9], 128
        %v784 = vld [vmem:[%s783] sm:$0xf]
        %v785 = vld [vmem:[%s783 + $0x4] sm:$0xf]
        %v786 = vld [vmem:[%s783 + $0x8] sm:$0xf]
        %v787 = vld [vmem:[%s783 + $0xc] sm:$0xf]
        %v788 = vld [vmem:[%s783 + $0x10] sm:$0xf]
        %v789 = vld [vmem:[%s783 + $0x14] sm:$0xf]
        %v790 = vld [vmem:[%s783 + $0x18] sm:$0xf]
        %v791 = vld [vmem:[%s783 + $0x1c] sm:$0xf]
        %v792 = vld [vmem:[%s783 + $0x20] sm:$0xf]
        %v793 = vld [vmem:[%s783 + $0x24] sm:$0xf]
        %v794 = vld [vmem:[%s783 + $0x28] sm:$0xf]
        %v795 = vld [vmem:[%s783 + $0x2c] sm:$0xf]
        %v796 = vld [vmem:[%s783 + $0x30] sm:$0xf]
        %v797 = vld [vmem:[%s783 + $0x34] sm:$0xf]
        %v798 = vld [vmem:[%s783 + $0x38] sm:$0xf]
        %v799 = vld [vmem:[%s783 + $0x3c] sm:$0xf]
        %v800 = vld [vmem:[%s4] sm:$0x1]
        %v817 = vunpack.c.l.b16 %v767
        %v818 = vunpack.c.l.b16 %v768
        %v819 = vunpack.c.l.b16 %v769
        %v820 = vunpack.c.l.b16 %v770
        %v821 = vunpack.c.l.b16 %v771
        %v822 = vunpack.c.l.b16 %v772
        %v823 = vunpack.c.l.b16 %v773
        %v824 = vunpack.c.l.b16 %v774
        %v825 = vunpack.c.l.b16 %v775
        %v826 = vunpack.c.l.b16 %v776
        %v827 = vunpack.c.l.b16 %v777
        %v828 = vunpack.c.l.b16 %v778
        %v829 = vunpack.c.l.b16 %v779
        %v830 = vunpack.c.l.b16 %v780
        %v831 = vunpack.c.l.b16 %v781
        %v832 = vunpack.c.l.b16 %v782
        %v833 = vpack.c.b16 %v818, %v817
        %v834 = vpack.c.b16 %v820, %v819
        %v835 = vpack.c.b16 %v822, %v821
        %v836 = vpack.c.b16 %v824, %v823
        %v837 = vpack.c.b16 %v826, %v825
        %v838 = vpack.c.b16 %v828, %v827
        %v839 = vpack.c.b16 %v830, %v829
        %v840 = vpack.c.b16 %v832, %v831
        %849 = vmatprep.subr.bf16.mxu0 0
        %850 = vmatpush1.bf16.msra.mxu0 %v833
        %851 = vmatprep.subr.bf16.mxu0 0
        %852 = vmatpush1.bf16.msra.mxu0 %v834
        %853 = vmatprep.subr.bf16.mxu0 0
        %854 = vmatpush1.bf16.msra.mxu0 %v835
        %855 = vmatprep.subr.bf16.mxu0 0
        %856 = vmatpush1.bf16.msra.mxu0 %v836
        %857 = vmatprep.subr.bf16.mxu0 0
        %858 = vmatpush1.bf16.msra.mxu0 %v837
        %859 = vmatprep.subr.bf16.mxu0 0
        %860 = vmatpush1.bf16.msra.mxu0 %v838
        %861 = vmatprep.subr.bf16.mxu0 0
        %862 = vmatpush1.bf16.msra.mxu0 %v839
        %863 = vmatprep.subr.bf16.mxu0 0
        %864 = vmatpush1.bf16.msra.mxu0 %v840
        %865 = vmatprep.subr.bf16.mxu0 0
        %866 = vmatpush1.bf16.msra.mxu0 0
        %867 = vmatprep.subr.bf16.mxu0 0
        %868 = vmatpush1.bf16.msra.mxu0 0
        %869 = vmatprep.subr.bf16.mxu0 0
        %870 = vmatpush1.bf16.msra.mxu0 0
        %871 = vmatprep.subr.bf16.mxu0 0
        %872 = vmatpush1.bf16.msra.mxu0 0
        %873 = vmatprep.subr.bf16.mxu0 0
        %874 = vmatpush1.bf16.msra.mxu0 0
        %875 = vmatprep.subr.bf16.mxu0 0
        %876 = vmatpush1.bf16.msra.mxu0 0
        %877 = vmatprep.subr.bf16.mxu0 0
        %878 = vmatpush1.bf16.msra.mxu0 0
        %879 = vmatprep.subr.bf16.mxu0 0
        %880 = vmatpush1.bf16.msra.mxu0 0
        %881 = vmatprep.mubr.bf16.mxu0 0
        %882 = vmatmul.mubr.bf16.gmra.mrb[0].mxu0 %v748
        %v883 = vpop.f32.mrb[0].mxu0
        %v884 = vadd.f32 0.0, %v883
        %v885 = vpop.f32.mrb[0].mxu0
        %v886 = vpop.f32.mrb[0].mxu0
        %v887 = vadd.f32 0.0, %v886
        %v888 = vpop.f32.mrb[0].mxu0
        %889 = vmatprep.mubr.bf16.mxu0 0
        %890 = vmatmul.mubr.bf16.gmra.mrb[0].mxu0 %v749
        %v891 = vpop.f32.mrb[0].mxu0
        %v892 = vadd.f32 0.0, %v891
        %v893 = vpop.f32.mrb[0].mxu0
        %v894 = vpop.f32.mrb[0].mxu0
        %v895 = vadd.f32 0.0, %v894
        %v896 = vpop.f32.mrb[0].mxu0
        %897 = vdwg.mxu0
        %v914 = vunpack.c.l.b16 %v750
        %v915 = vunpack.c.l.b16 %v751
        %v916 = vunpack.c.l.b16 %v752
        %v917 = vunpack.c.l.b16 %v753
        %v918 = vunpack.c.l.b16 %v754
        %v919 = vunpack.c.l.b16 %v755
        %v920 = vunpack.c.l.b16 %v756
        %v921 = vunpack.c.l.b16 %v757
        %v922 = vunpack.c.l.b16 %v758
        %v923 = vunpack.c.l.b16 %v759
        %v924 = vunpack.c.l.b16 %v760
        %v925 = vunpack.c.l.b16 %v761
        %v926 = vunpack.c.l.b16 %v762
        %v927 = vunpack.c.l.b16 %v763
        %v928 = vunpack.c.l.b16 %v764
        %v929 = vunpack.c.l.b16 %v765
        %v930 = vpack.c.b16 %v915, %v914
        %v931 = vpack.c.b16 %v917, %v916
        %v932 = vpack.c.b16 %v919, %v918
        %v933 = vpack.c.b16 %v921, %v920
        %v934 = vpack.c.b16 %v923, %v922
        %v935 = vpack.c.b16 %v925, %v924
        %v936 = vpack.c.b16 %v927, %v926
        %v937 = vpack.c.b16 %v929, %v928
        %946 = vmatprep.subr.bf16.mxu0 0
        %947 = vmatpush1.bf16.msra.mxu0 %v930
        %948 = vmatprep.subr.bf16.mxu0 0
        %949 = vmatpush1.bf16.msra.mxu0 %v931
        %950 = vmatprep.subr.bf16.mxu0 0
        %951 = vmatpush1.bf16.msra.mxu0 %v932
        %952 = vmatprep.subr.bf16.mxu0 0
        %953 = vmatpush1.bf16.msra.mxu0 %v933
        %954 = vmatprep.subr.bf16.mxu0 0
        %955 = vmatpush1.bf16.msra.mxu0 %v934
        %956 = vmatprep.subr.bf16.mxu0 0
        %957 = vmatpush1.bf16.msra.mxu0 %v935
        %958 = vmatprep.subr.bf16.mxu0 0
        %959 = vmatpush1.bf16.msra.mxu0 %v936
        %960 = vmatprep.subr.bf16.mxu0 0
        %961 = vmatpush1.bf16.msra.mxu0 %v937
        %962 = vmatprep.subr.bf16.mxu0 0
        %963 = vmatpush1.bf16.msra.mxu0 0
        %964 = vmatprep.subr.bf16.mxu0 0
        %965 = vmatpush1.bf16.msra.mxu0 0
        %966 = vmatprep.subr.bf16.mxu0 0
        %967 = vmatpush1.bf16.msra.mxu0 0
        %968 = vmatprep.subr.bf16.mxu0 0
        %969 = vmatpush1.bf16.msra.mxu0 0
        %970 = vmatprep.subr.bf16.mxu0 0
        %971 = vmatpush1.bf16.msra.mxu0 0
        %972 = vmatprep.subr.bf16.mxu0 0
        %973 = vmatpush1.bf16.msra.mxu0 0
        %974 = vmatprep.subr.bf16.mxu0 0
        %975 = vmatpush1.bf16.msra.mxu0 0
        %976 = vmatprep.subr.bf16.mxu0 0
        %977 = vmatpush1.bf16.msra.mxu0 0
        %978 = vmatprep.mubr.bf16.mxu0 0
        %979 = vmatmul.mubr.bf16.gmra.mrb[0].mxu0 %v748
        %v980 = vpop.f32.mrb[0].mxu0
        %v981 = vadd.f32 0.0, %v980
        %v982 = vpop.f32.mrb[0].mxu0
        %v983 = vpop.f32.mrb[0].mxu0
        %v984 = vadd.f32 0.0, %v983
        %v985 = vpop.f32.mrb[0].mxu0
        %986 = vmatprep.mubr.bf16.mxu0 0
        %987 = vmatmul.mubr.bf16.gmra.mrb[0].mxu0 %v749
        %v988 = vpop.f32.mrb[0].mxu0
        %v989 = vadd.f32 0.0, %v988
        %v990 = vpop.f32.mrb[0].mxu0
        %v991 = vpop.f32.mrb[0].mxu0
        %v992 = vadd.f32 0.0, %v991
        %v993 = vpop.f32.mrb[0].mxu0
        %994 = vdwg.mxu0
        %v999 = vrot.slane %v981, 7
        %v1000 = vrot.slane %v984, 7
        %v1001 = vsel %vm519, %v999, %v1000
        %v1002 = vrot.slane %v989, 7
        %v1003 = vsel %vm519, %v1000, %v1002
        %v1004 = vrot.slane %v992, 7
        %v1005 = vsel %vm519, %v1002, %v1004
        %v1010 = vadd.f32 %v884, %v999
        %v1011 = vadd.f32 %v887, %v1001
        %v1012 = vadd.f32 %v892, %v1003
        %v1013 = vadd.f32 %v895, %v1005
        %v1030 = vunpack.c.l.b16 %v784
        %v1031 = vunpack.c.l.b16 %v785
        %v1032 = vunpack.c.l.b16 %v786
        %v1033 = vunpack.c.l.b16 %v787
        %v1034 = vunpack.c.l.b16 %v788
        %v1035 = vunpack.c.l.b16 %v789
        %v1036 = vunpack.c.l.b16 %v790
        %v1037 = vunpack.c.l.b16 %v791
        %v1038 = vunpack.c.l.b16 %v792
        %v1039 = vunpack.c.l.b16 %v793
        %v1040 = vunpack.c.l.b16 %v794
        %v1041 = vunpack.c.l.b16 %v795
        %v1042 = vunpack.c.l.b16 %v796
        %v1043 = vunpack.c.l.b16 %v797
        %v1044 = vunpack.c.l.b16 %v798
        %v1045 = vunpack.c.l.b16 %v799
        %v1046 = vpack.c.b16 %v1031, %v1030
        %v1047 = vpack.c.b16 %v1033, %v1032
        %v1048 = vpack.c.b16 %v1035, %v1034
        %v1049 = vpack.c.b16 %v1037, %v1036
        %v1050 = vpack.c.b16 %v1039, %v1038
        %v1051 = vpack.c.b16 %v1041, %v1040
        %v1052 = vpack.c.b16 %v1043, %v1042
        %v1053 = vpack.c.b16 %v1045, %v1044
        %1062 = vmatprep.subr.bf16.mxu0 0
        %1063 = vmatpush1.bf16.msra.mxu0 %v1046
        %1064 = vmatprep.subr.bf16.mxu0 0
        %1065 = vmatpush1.bf16.msra.mxu0 %v1047
        %1066 = vmatprep.subr.bf16.mxu0 0
        %1067 = vmatpush1.bf16.msra.mxu0 %v1048
        %1068 = vmatprep.subr.bf16.mxu0 0
        %1069 = vmatpush1.bf16.msra.mxu0 %v1049
        %1070 = vmatprep.subr.bf16.mxu0 0
        %1071 = vmatpush1.bf16.msra.mxu0 %v1050
        %1072 = vmatprep.subr.bf16.mxu0 0
        %1073 = vmatpush1.bf16.msra.mxu0 %v1051
        %1074 = vmatprep.subr.bf16.mxu0 0
        %1075 = vmatpush1.bf16.msra.mxu0 %v1052
        %1076 = vmatprep.subr.bf16.mxu0 0
        %1077 = vmatpush1.bf16.msra.mxu0 %v1053
        %1078 = vmatprep.subr.bf16.mxu0 0
        %1079 = vmatpush1.bf16.msra.mxu0 0
        %1080 = vmatprep.subr.bf16.mxu0 0
        %1081 = vmatpush1.bf16.msra.mxu0 0
        %1082 = vmatprep.subr.bf16.mxu0 0
        %1083 = vmatpush1.bf16.msra.mxu0 0
        %1084 = vmatprep.subr.bf16.mxu0 0
        %1085 = vmatpush1.bf16.msra.mxu0 0
        %1086 = vmatprep.subr.bf16.mxu0 0
        %1087 = vmatpush1.bf16.msra.mxu0 0
        %1088 = vmatprep.subr.bf16.mxu0 0
        %1089 = vmatpush1.bf16.msra.mxu0 0
        %1090 = vmatprep.subr.bf16.mxu0 0
        %1091 = vmatpush1.bf16.msra.mxu0 0
        %1092 = vmatprep.subr.bf16.mxu0 0
        %1093 = vmatpush1.bf16.msra.mxu0 0
        %1094 = vmatprep.mubr.bf16.mxu0 0
        %1095 = vmatmul.mubr.bf16.gmra.mrb[0].mxu0 %v748
        %v1096 = vpop.f32.mrb[0].mxu0
        %v1097 = vadd.f32 0.0, %v1096
        %v1098 = vpop.f32.mrb[0].mxu0
        %v1099 = vpop.f32.mrb[0].mxu0
        %v1100 = vadd.f32 0.0, %v1099
        %v1101 = vpop.f32.mrb[0].mxu0
        %1102 = vmatprep.mubr.bf16.mxu0 0
        %1103 = vmatmul.mubr.bf16.gmra.mrb[0].mxu0 %v749
        %v1104 = vpop.f32.mrb[0].mxu0
        %v1105 = vadd.f32 0.0, %v1104
        %v1106 = vpop.f32.mrb[0].mxu0
        %v1107 = vpop.f32.mrb[0].mxu0
        %v1108 = vadd.f32 0.0, %v1107
        %v1109 = vpop.f32.mrb[0].mxu0
        %1110 = vdwg.mxu0
        %v1115 = vrot.slane %v1097, 1
        %v1116 = vrot.slane %v1100, 1
        %v1117 = vsel %vm636, %v1115, %v1116
        %v1118 = vrot.slane %v1105, 1
        %v1119 = vsel %vm636, %v1116, %v1118
        %v1120 = vrot.slane %v1108, 1
        %v1121 = vsel %vm636, %v1118, %v1120
        %v1126 = vadd.f32 %v1010, %v1117
        %v1127 = vadd.f32 %v1011, %v1119
        %v1128 = vadd.f32 %v1012, %v1121
        %v1129 = vadd.f32 %v1013, %v1120
        %v1131 = vlaneseq
        %v1132 = vshrl.u32 %v1131, 7
        %v1133 = vsub.s32 0, %v1132
        %v1134 = vrot.slane %v800, %v1133
        %v1136 = vadd.f32 %v1126, %v1134
        %v1137 = vadd.f32 %v1127, %v1134
        %v1138 = vadd.f32 %v1128, %v1134
        %v1139 = vadd.f32 %v1129, %v1134
        %v1140 = vxor.u32 %v1136, 2147483648
        %v1141 = vxor.u32 %v1137, 2147483648
        %v1142 = vxor.u32 %v1138, 2147483648
        %v1143 = vxor.u32 %v1139, 2147483648
        %v1144 = vmul.f32 %v1140, 1.442695
        %v1145 = vpow.pop %v1144
        %v1146 = vmul.f32 %v1141, 1.442695
        %v1147 = vpow.pop %v1146
        %v1148 = vmul.f32 %v1142, 1.442695
        %v1149 = vpow.pop %v1148
        %v1150 = vmul.f32 %v1143, 1.442695
        %v1151 = vpow.pop %v1150
        %v1152 = vadd.f32 %v1145, 1.0
        %v1153 = vadd.f32 %v1147, 1.0
        %v1154 = vadd.f32 %v1149, 1.0
        %v1155 = vadd.f32 %v1151, 1.0
        %v1156 = vrcp.pop %v1152
        %v1157 = vmul.f32 1.0, %v1156
        %v1158 = vrcp.pop %v1153
        %v1159 = vmul.f32 1.0, %v1158
        %v1160 = vrcp.pop %v1154
        %v1161 = vmul.f32 1.0, %v1160
        %v1162 = vrcp.pop %v1155
        %v1163 = vmul.f32 1.0, %v1162
        %v1164 = vmul.f32 %v1136, %v1157
        %v1165 = vmul.f32 %v1137, %v1159
        %v1166 = vmul.f32 %v1138, %v1161
        %v1167 = vmul.f32 %v1139, %v1163
        %v1172 = vrot.slane %v1164, 1
        %v1173 = vrot.slane %v1165, 1
        %v1174 = vsel %vm636, %v1172, %v1173
        %v1175 = vrot.slane %v1166, 1
        %v1176 = vsel %vm636, %v1173, %v1175
        %v1177 = vrot.slane %v1167, 1
        %v1178 = vsel %vm636, %v1175, %v1177
        %v1183 = vsel %vm694, %v1174, 0.0
        %v1184 = vsel %vm695, %v1176, 0.0
        %v1185 = vsel %vm696, %v1178, 0.0
        %v1186 = vsel %vm697, %v1177, 0.0
        %v1187 = vpack.c.bf16 %v1184, %v1183
        %v1188 = vpack.c.bf16 %v1186, %v1185
        %v1190 = vshrl.u32 %v1187, 16
        %v1192 = vrot.slane %v1190, 7
        %v1193 = vshll.u32 %v1187, 16
        %v1195 = vor.u32 %v1192, %v1193
        %v1197 = vshrl.u32 %v1188, 16
        %v1199 = vrot.slane %v1197, 7
        %v1200 = vshll.u32 %v1188, 16
        %v1202 = vor.u32 %v1199, %v1200
        %v1203 = vsel %vm719, %v1192, %v1202
        %v1206 = vld [vmem:[#allocation4] sm:$0xff]
        %v1207 = vsel %vm739, %v1195, %v1206
        %1208 = vst [vmem:[#allocation4] sm:$0xff] %v1207
        %v1209 = vld [vmem:[#allocation4 + $0x8] sm:$0xff]
        %v1210 = vsel %vm744, %v1203, %v1209
        %1211 = vst [vmem:[#allocation4 + $0x8] sm:$0xff] %v1210
        %v1212 = vld [vmem:[#allocation4] sm:$0xff]
        %v1213 = vld [vmem:[#allocation4 + $0x8] sm:$0xff]
        %s1214 = scalar_lea.vmem [#allocation9], 192
        %v1215 = vld [vmem:[%s1214] sm:$0xf]
        %v1216 = vld [vmem:[%s1214 + $0x4] sm:$0xf]
        %v1217 = vld [vmem:[%s1214 + $0x8] sm:$0xf]
        %v1218 = vld [vmem:[%s1214 + $0xc] sm:$0xf]
        %v1219 = vld [vmem:[%s1214 + $0x10] sm:$0xf]
        %v1220 = vld [vmem:[%s1214 + $0x14] sm:$0xf]
        %v1221 = vld [vmem:[%s1214 + $0x18] sm:$0xf]
        %v1222 = vld [vmem:[%s1214 + $0x1c] sm:$0xf]
        %v1223 = vld [vmem:[%s1214 + $0x20] sm:$0xf]
        %v1224 = vld [vmem:[%s1214 + $0x24] sm:$0xf]
        %v1225 = vld [vmem:[%s1214 + $0x28] sm:$0xf]
        %v1226 = vld [vmem:[%s1214 + $0x2c] sm:$0xf]
        %v1227 = vld [vmem:[%s1214 + $0x30] sm:$0xf]
        %v1228 = vld [vmem:[%s1214 + $0x34] sm:$0xf]
        %v1229 = vld [vmem:[%s1214 + $0x38] sm:$0xf]
        %v1230 = vld [vmem:[%s1214 + $0x3c] sm:$0xf]
        %s1231 = scalar_lea.vmem [#allocation9], 256
        %v1232 = vld [vmem:[%s1231] sm:$0xf]
        %v1233 = vld [vmem:[%s1231 + $0x4] sm:$0xf]
        %v1234 = vld [vmem:[%s1231 + $0x8] sm:$0xf]
        %v1235 = vld [vmem:[%s1231 + $0xc] sm:$0xf]
        %v1236 = vld [vmem:[%s1231 + $0x10] sm:$0xf]
        %v1237 = vld [vmem:[%s1231 + $0x14] sm:$0xf]
        %v1238 = vld [vmem:[%s1231 + $0x18] sm:$0xf]
        %v1239 = vld [vmem:[%s1231 + $0x1c] sm:$0xf]
        %v1240 = vld [vmem:[%s1231 + $0x20] sm:$0xf]
        %v1241 = vld [vmem:[%s1231 + $0x24] sm:$0xf]
        %v1242 = vld [vmem:[%s1231 + $0x28] sm:$0xf]
        %v1243 = vld [vmem:[%s1231 + $0x2c] sm:$0xf]
        %v1244 = vld [vmem:[%s1231 + $0x30] sm:$0xf]
        %v1245 = vld [vmem:[%s1231 + $0x34] sm:$0xf]
        %v1246 = vld [vmem:[%s1231 + $0x38] sm:$0xf]
        %v1247 = vld [vmem:[%s1231 + $0x3c] sm:$0xf]
        %s1248 = scalar_lea.vmem [#allocation9], 320
        %v1249 = vld [vmem:[%s1248] sm:$0xf]
        %v1250 = vld [vmem:[%s1248 + $0x4] sm:$0xf]
        %v1251 = vld [vmem:[%s1248 + $0x8] sm:$0xf]
        %v1252 = vld [vmem:[%s1248 + $0xc] sm:$0xf]
        %v1253 = vld [vmem:[%s1248 + $0x10] sm:$0xf]
        %v1254 = vld [vmem:[%s1248 + $0x14] sm:$0xf]
        %v1255 = vld [vmem:[%s1248 + $0x18] sm:$0xf]
        %v1256 = vld [vmem:[%s1248 + $0x1c] sm:$0xf]
        %v1257 = vld [vmem:[%s1248 + $0x20] sm:$0xf]
        %v1258 = vld [vmem:[%s1248 + $0x24] sm:$0xf]
        %v1259 = vld [vmem:[%s1248 + $0x28] sm:$0xf]
        %v1260 = vld [vmem:[%s1248 + $0x2c] sm:$0xf]
        %v1261 = vld [vmem:[%s1248 + $0x30] sm:$0xf]
        %v1262 = vld [vmem:[%s1248 + $0x34] sm:$0xf]
        %v1263 = vld [vmem:[%s1248 + $0x38] sm:$0xf]
        %v1264 = vld [vmem:[%s1248 + $0x3c] sm:$0xf]
        %s1265 = scalar_lea.vmem %s4, 1
        %v1266 = vld [vmem:[%s1265] sm:$0x1]
        %v1283 = vunpack.c.l.b16 %v1232
        %v1284 = vunpack.c.l.b16 %v1233
        %v1285 = vunpack.c.l.b16 %v1234
        %v1286 = vunpack.c.l.b16 %v1235
        %v1287 = vunpack.c.l.b16 %v1236
        %v1288 = vunpack.c.l.b16 %v1237
        %v1289 = vunpack.c.l.b16 %v1238
        %v1290 = vunpack.c.l.b16 %v1239
        %v1291 = vunpack.c.l.b16 %v1240
        %v1292 = vunpack.c.l.b16 %v1241
        %v1293 = vunpack.c.l.b16 %v1242
        %v1294 = vunpack.c.l.b16 %v1243
        %v1295 = vunpack.c.l.b16 %v1244
        %v1296 = vunpack.c.l.b16 %v1245
        %v1297 = vunpack.c.l.b16 %v1246
        %v1298 = vunpack.c.l.b16 %v1247
        %v1299 = vpack.c.b16 %v1284, %v1283
        %v1300 = vpack.c.b16 %v1286, %v1285
        %v1301 = vpack.c.b16 %v1288, %v1287
        %v1302 = vpack.c.b16 %v1290, %v1289
        %v1303 = vpack.c.b16 %v1292, %v1291
        %v1304 = vpack.c.b16 %v1294, %v1293
        %v1305 = vpack.c.b16 %v1296, %v1295
        %v1306 = vpack.c.b16 %v1298, %v1297
        %1315 = vmatprep.subr.bf16.mxu0 0
        %1316 = vmatpush1.bf16.msra.mxu0 %v1299
        %1317 = vmatprep.subr.bf16.mxu0 0
        %1318 = vmatpush1.bf16.msra.mxu0 %v1300
        %1319 = vmatprep.subr.bf16.mxu0 0
        %1320 = vmatpush1.bf16.msra.mxu0 %v1301
        %1321 = vmatprep.subr.bf16.mxu0 0
        %1322 = vmatpush1.bf16.msra.mxu0 %v1302
        %1323 = vmatprep.subr.bf16.mxu0 0
        %1324 = vmatpush1.bf16.msra.mxu0 %v1303
        %1325 = vmatprep.subr.bf16.mxu0 0
        %1326 = vmatpush1.bf16.msra.mxu0 %v1304
        %1327 = vmatprep.subr.bf16.mxu0 0
        %1328 = vmatpush1.bf16.msra.mxu0 %v1305
        %1329 = vmatprep.subr.bf16.mxu0 0
        %1330 = vmatpush1.bf16.msra.mxu0 %v1306
        %1331 = vmatprep.subr.bf16.mxu0 0
        %1332 = vmatpush1.bf16.msra.mxu0 0
        %1333 = vmatprep.subr.bf16.mxu0 0
        %1334 = vmatpush1.bf16.msra.mxu0 0
        %1335 = vmatprep.subr.bf16.mxu0 0
        %1336 = vmatpush1.bf16.msra.mxu0 0
        %1337 = vmatprep.subr.bf16.mxu0 0
        %1338 = vmatpush1.bf16.msra.mxu0 0
        %1339 = vmatprep.subr.bf16.mxu0 0
        %1340 = vmatpush1.bf16.msra.mxu0 0
        %1341 = vmatprep.subr.bf16.mxu0 0
        %1342 = vmatpush1.bf16.msra.mxu0 0
        %1343 = vmatprep.subr.bf16.mxu0 0
        %1344 = vmatpush1.bf16.msra.mxu0 0
        %1345 = vmatprep.subr.bf16.mxu0 0
        %1346 = vmatpush1.bf16.msra.mxu0 0
        %1347 = vmatprep.mubr.bf16.mxu0 0
        %1348 = vmatmul.mubr.bf16.gmra.mrb[0].mxu0 %v1212
        %v1349 = vpop.f32.mrb[0].mxu0
        %v1350 = vadd.f32 0.0, %v1349
        %v1351 = vpop.f32.mrb[0].mxu0
        %v1352 = vpop.f32.mrb[0].mxu0
        %v1353 = vadd.f32 0.0, %v1352
        %v1354 = vpop.f32.mrb[0].mxu0
        %1355 = vmatprep.mubr.bf16.mxu0 0
        %1356 = vmatmul.mubr.bf16.gmra.mrb[0].mxu0 %v1213
        %v1357 = vpop.f32.mrb[0].mxu0
        %v1358 = vadd.f32 0.0, %v1357
        %v1359 = vpop.f32.mrb[0].mxu0
        %v1360 = vpop.f32.mrb[0].mxu0
        %v1361 = vadd.f32 0.0, %v1360
        %v1362 = vpop.f32.mrb[0].mxu0
        %1363 = vdwg.mxu0
        %v1380 = vunpack.c.l.b16 %v1215
        %v1381 = vunpack.c.l.b16 %v1216
        %v1382 = vunpack.c.l.b16 %v1217
        %v1383 = vunpack.c.l.b16 %v1218
        %v1384 = vunpack.c.l.b16 %v1219
        %v1385 = vunpack.c.l.b16 %v1220
        %v1386 = vunpack.c.l.b16 %v1221
        %v1387 = vunpack.c.l.b16 %v1222
        %v1388 = vunpack.c.l.b16 %v1223
        %v1389 = vunpack.c.l.b16 %v1224
        %v1390 = vunpack.c.l.b16 %v1225
        %v1391 = vunpack.c.l.b16 %v1226
        %v1392 = vunpack.c.l.b16 %v1227
        %v1393 = vunpack.c.l.b16 %v1228
        %v1394 = vunpack.c.l.b16 %v1229
        %v1395 = vunpack.c.l.b16 %v1230
        %v1396 = vpack.c.b16 %v1381, %v1380
        %v1397 = vpack.c.b16 %v1383, %v1382
        %v1398 = vpack.c.b16 %v1385, %v1384
        %v1399 = vpack.c.b16 %v1387, %v1386
        %v1400 = vpack.c.b16 %v1389, %v1388
        %v1401 = vpack.c.b16 %v1391, %v1390
        %v1402 = vpack.c.b16 %v1393, %v1392
        %v1403 = vpack.c.b16 %v1395, %v1394
        %1412 = vmatprep.subr.bf16.mxu0 0
        %1413 = vmatpush1.bf16.msra.mxu0 %v1396
        %1414 = vmatprep.subr.bf16.mxu0 0
        %1415 = vmatpush1.bf16.msra.mxu0 %v1397
        %1416 = vmatprep.subr.bf16.mxu0 0
        %1417 = vmatpush1.bf16.msra.mxu0 %v1398
        %1418 = vmatprep.subr.bf16.mxu0 0
        %1419 = vmatpush1.bf16.msra.mxu0 %v1399
        %1420 = vmatprep.subr.bf16.mxu0 0
        %1421 = vmatpush1.bf16.msra.mxu0 %v1400
        %1422 = vmatprep.subr.bf16.mxu0 0
        %1423 = vmatpush1.bf16.msra.mxu0 %v1401
        %1424 = vmatprep.subr.bf16.mxu0 0
        %1425 = vmatpush1.bf16.msra.mxu0 %v1402
        %1426 = vmatprep.subr.bf16.mxu0 0
        %1427 = vmatpush1.bf16.msra.mxu0 %v1403
        %1428 = vmatprep.subr.bf16.mxu0 0
        %1429 = vmatpush1.bf16.msra.mxu0 0
        %1430 = vmatprep.subr.bf16.mxu0 0
        %1431 = vmatpush1.bf16.msra.mxu0 0
        %1432 = vmatprep.subr.bf16.mxu0 0
        %1433 = vmatpush1.bf16.msra.mxu0 0
        %1434 = vmatprep.subr.bf16.mxu0 0
        %1435 = vmatpush1.bf16.msra.mxu0 0
        %1436 = vmatprep.subr.bf16.mxu0 0
        %1437 = vmatpush1.bf16.msra.mxu0 0
        %1438 = vmatprep.subr.bf16.mxu0 0
        %1439 = vmatpush1.bf16.msra.mxu0 0
        %1440 = vmatprep.subr.bf16.mxu0 0
        %1441 = vmatpush1.bf16.msra.mxu0 0
        %1442 = vmatprep.subr.bf16.mxu0 0
        %1443 = vmatpush1.bf16.msra.mxu0 0
        %1444 = vmatprep.mubr.bf16.mxu0 0
        %1445 = vmatmul.mubr.bf16.gmra.mrb[0].mxu0 %v1212
        %v1446 = vpop.f32.mrb[0].mxu0
        %v1447 = vadd.f32 0.0, %v1446
        %v1448 = vpop.f32.mrb[0].mxu0
        %v1449 = vpop.f32.mrb[0].mxu0
        %v1450 = vadd.f32 0.0, %v1449
        %v1451 = vpop.f32.mrb[0].mxu0
        %1452 = vmatprep.mubr.bf16.mxu0 0
        %1453 = vmatmul.mubr.bf16.gmra.mrb[0].mxu0 %v1213
        %v1454 = vpop.f32.mrb[0].mxu0
        %v1455 = vadd.f32 0.0, %v1454
        %v1456 = vpop.f32.mrb[0].mxu0
        %v1457 = vpop.f32.mrb[0].mxu0
        %v1458 = vadd.f32 0.0, %v1457
        %v1459 = vpop.f32.mrb[0].mxu0
        %1460 = vdwg.mxu0
        %v1465 = vrot.slane %v1447, 7
        %v1466 = vrot.slane %v1450, 7
        %v1467 = vsel %vm519, %v1465, %v1466
        %v1468 = vrot.slane %v1455, 7
        %v1469 = vsel %vm519, %v1466, %v1468
        %v1470 = vrot.slane %v1458, 7
        %v1471 = vsel %vm519, %v1468, %v1470
        %v1476 = vadd.f32 %v1350, %v1465
        %v1477 = vadd.f32 %v1353, %v1467
        %v1478 = vadd.f32 %v1358, %v1469
        %v1479 = vadd.f32 %v1361, %v1471
        %v1496 = vunpack.c.l.b16 %v1249
        %v1497 = vunpack.c.l.b16 %v1250
        %v1498 = vunpack.c.l.b16 %v1251
        %v1499 = vunpack.c.l.b16 %v1252
        %v1500 = vunpack.c.l.b16 %v1253
        %v1501 = vunpack.c.l.b16 %v1254
        %v1502 = vunpack.c.l.b16 %v1255
        %v1503 = vunpack.c.l.b16 %v1256
        %v1504 = vunpack.c.l.b16 %v1257
        %v1505 = vunpack.c.l.b16 %v1258
        %v1506 = vunpack.c.l.b16 %v1259
        %v1507 = vunpack.c.l.b16 %v1260
        %v1508 = vunpack.c.l.b16 %v1261
        %v1509 = vunpack.c.l.b16 %v1262
        %v1510 = vunpack.c.l.b16 %v1263
        %v1511 = vunpack.c.l.b16 %v1264
        %v1512 = vpack.c.b16 %v1497, %v1496
        %v1513 = vpack.c.b16 %v1499, %v1498
        %v1514 = vpack.c.b16 %v1501, %v1500
        %v1515 = vpack.c.b16 %v1503, %v1502
        %v1516 = vpack.c.b16 %v1505, %v1504
        %v1517 = vpack.c.b16 %v1507, %v1506
        %v1518 = vpack.c.b16 %v1509, %v1508
        %v1519 = vpack.c.b16 %v1511, %v1510
        %1528 = vmatprep.subr.bf16.mxu0 0
        %1529 = vmatpush1.bf16.msra.mxu0 %v1512
        %1530 = vmatprep.subr.bf16.mxu0 0
        %1531 = vmatpush1.bf16.msra.mxu0 %v1513
        %1532 = vmatprep.subr.bf16.mxu0 0
        %1533 = vmatpush1.bf16.msra.mxu0 %v1514
        %1534 = vmatprep.subr.bf16.mxu0 0
        %1535 = vmatpush1.bf16.msra.mxu0 %v1515
        %1536 = vmatprep.subr.bf16.mxu0 0
        %1537 = vmatpush1.bf16.msra.mxu0 %v1516
        %1538 = vmatprep.subr.bf16.mxu0 0
        %1539 = vmatpush1.bf16.msra.mxu0 %v1517
        %1540 = vmatprep.subr.bf16.mxu0 0
        %1541 = vmatpush1.bf16.msra.mxu0 %v1518
        %1542 = vmatprep.subr.bf16.mxu0 0
        %1543 = vmatpush1.bf16.msra.mxu0 %v1519
        %1544 = vmatprep.subr.bf16.mxu0 0
        %1545 = vmatpush1.bf16.msra.mxu0 0
        %1546 = vmatprep.subr.bf16.mxu0 0
        %1547 = vmatpush1.bf16.msra.mxu0 0
        %1548 = vmatprep.subr.bf16.mxu0 0
        %1549 = vmatpush1.bf16.msra.mxu0 0
        %1550 = vmatprep.subr.bf16.mxu0 0
        %1551 = vmatpush1.bf16.msra.mxu0 0
        %1552 = vmatprep.subr.bf16.mxu0 0
        %1553 = vmatpush1.bf16.msra.mxu0 0
        %1554 = vmatprep.subr.bf16.mxu0 0
        %1555 = vmatpush1.bf16.msra.mxu0 0
        %1556 = vmatprep.subr.bf16.mxu0 0
        %1557 = vmatpush1.bf16.msra.mxu0 0
        %1558 = vmatprep.subr.bf16.mxu0 0
        %1559 = vmatpush1.bf16.msra.mxu0 0
        %1560 = vmatprep.mubr.bf16.mxu0 0
        %1561 = vmatmul.mubr.bf16.gmra.mrb[0].mxu0 %v1212
        %v1562 = vpop.f32.mrb[0].mxu0
        %v1563 = vadd.f32 0.0, %v1562
        %v1564 = vpop.f32.mrb[0].mxu0
        %v1565 = vpop.f32.mrb[0].mxu0
        %v1566 = vadd.f32 0.0, %v1565
        %v1567 = vpop.f32.mrb[0].mxu0
        %1568 = vmatprep.mubr.bf16.mxu0 0
        %1569 = vmatmul.mubr.bf16.gmra.mrb[0].mxu0 %v1213
        %v1570 = vpop.f32.mrb[0].mxu0
        %v1571 = vadd.f32 0.0, %v1570
        %v1572 = vpop.f32.mrb[0].mxu0
        %v1573 = vpop.f32.mrb[0].mxu0
        %v1574 = vadd.f32 0.0, %v1573
        %v1575 = vpop.f32.mrb[0].mxu0
        %1576 = vdwg.mxu0
        %v1581 = vrot.slane %v1563, 1
        %v1582 = vrot.slane %v1566, 1
        %v1583 = vsel %vm636, %v1581, %v1582
        %v1584 = vrot.slane %v1571, 1
        %v1585 = vsel %vm636, %v1582, %v1584
        %v1586 = vrot.slane %v1574, 1
        %v1587 = vsel %vm636, %v1584, %v1586
        %v1592 = vadd.f32 %v1476, %v1583
        %v1593 = vadd.f32 %v1477, %v1585
        %v1594 = vadd.f32 %v1478, %v1587
        %v1595 = vadd.f32 %v1479, %v1586
        %v1597 = vlaneseq
        %v1598 = vshrl.u32 %v1597, 7
        %v1599 = vsub.s32 0, %v1598
        %v1600 = vrot.slane %v1266, %v1599
        %v1602 = vadd.f32 %v1592, %v1600
        %v1603 = vadd.f32 %v1593, %v1600
        %v1604 = vadd.f32 %v1594, %v1600
        %v1605 = vadd.f32 %v1595, %v1600
        %v1606 = vxor.u32 %v1602, 2147483648
        %v1607 = vxor.u32 %v1603, 2147483648
        %v1608 = vxor.u32 %v1604, 2147483648
        %v1609 = vxor.u32 %v1605, 2147483648
        %v1610 = vmul.f32 %v1606, 1.442695
        %v1611 = vpow.pop %v1610
        %v1612 = vmul.f32 %v1607, 1.442695
        %v1613 = vpow.pop %v1612
        %v1614 = vmul.f32 %v1608, 1.442695
        %v1615 = vpow.pop %v1614
        %v1616 = vmul.f32 %v1609, 1.442695
        %v1617 = vpow.pop %v1616
        %v1618 = vadd.f32 %v1611, 1.0
        %v1619 = vadd.f32 %v1613, 1.0
        %v1620 = vadd.f32 %v1615, 1.0
        %v1621 = vadd.f32 %v1617, 1.0
        %v1622 = vrcp.pop %v1618
        %v1623 = vmul.f32 1.0, %v1622
        %v1624 = vrcp.pop %v1619
        %v1625 = vmul.f32 1.0, %v1624
        %v1626 = vrcp.pop %v1620
        %v1627 = vmul.f32 1.0, %v1626
        %v1628 = vrcp.pop %v1621
        %v1629 = vmul.f32 1.0, %v1628
        %v1630 = vmul.f32 %v1602, %v1623
        %v1631 = vmul.f32 %v1603, %v1625
        %v1632 = vmul.f32 %v1604, %v1627
        %v1633 = vmul.f32 %v1605, %v1629
        %v1638 = vrot.slane %v1630, 1
        %v1639 = vrot.slane %v1631, 1
        %v1640 = vsel %vm636, %v1638, %v1639
        %v1641 = vrot.slane %v1632, 1
        %v1642 = vsel %vm636, %v1639, %v1641
        %v1643 = vrot.slane %v1633, 1
        %v1644 = vsel %vm636, %v1641, %v1643
        %v1649 = vsel %vm694, %v1640, 0.0
        %v1650 = vsel %vm695, %v1642, 0.0
        %v1651 = vsel %vm696, %v1644, 0.0
        %v1652 = vsel %vm697, %v1643, 0.0
        %v1653 = vpack.c.bf16 %v1650, %v1649
        %v1654 = vpack.c.bf16 %v1652, %v1651
        %v1656 = vshrl.u32 %v1653, 16
        %v1658 = vrot.slane %v1656, 7
        %v1659 = vshll.u32 %v1653, 16
        %v1661 = vor.u32 %v1658, %v1659
        %v1663 = vshrl.u32 %v1654, 16
        %v1665 = vrot.slane %v1663, 7
        %v1666 = vshll.u32 %v1654, 16
        %v1668 = vor.u32 %v1665, %v1666
        %v1669 = vsel %vm719, %v1658, %v1668
        %v1672 = vld [vmem:[#allocation3] sm:$0xff]
        %v1673 = vsel %vm739, %v1661, %v1672
        %1674 = vst [vmem:[#allocation3] sm:$0xff] %v1673
        %v1675 = vld [vmem:[#allocation3 + $0x8] sm:$0xff]
        %v1676 = vsel %vm744, %v1669, %v1675
        %1677 = vst [vmem:[#allocation3 + $0x8] sm:$0xff] %v1676
        %v1678 = vld [vmem:[#allocation3] sm:$0xff]
        %v1679 = vld [vmem:[#allocation3 + $0x8] sm:$0xff]
        %s1680 = scalar_lea.vmem [#allocation9], 384
        %v1681 = vld [vmem:[%s1680] sm:$0xf]
        %v1682 = vld [vmem:[%s1680 + $0x4] sm:$0xf]
        %v1683 = vld [vmem:[%s1680 + $0x8] sm:$0xf]
        %v1684 = vld [vmem:[%s1680 + $0xc] sm:$0xf]
        %v1685 = vld [vmem:[%s1680 + $0x10] sm:$0xf]
        %v1686 = vld [vmem:[%s1680 + $0x14] sm:$0xf]
        %v1687 = vld [vmem:[%s1680 + $0x18] sm:$0xf]
        %v1688 = vld [vmem:[%s1680 + $0x1c] sm:$0xf]
        %v1689 = vld [vmem:[%s1680 + $0x20] sm:$0xf]
        %v1690 = vld [vmem:[%s1680 + $0x24] sm:$0xf]
        %v1691 = vld [vmem:[%s1680 + $0x28] sm:$0xf]
        %v1692 = vld [vmem:[%s1680 + $0x2c] sm:$0xf]
        %v1693 = vld [vmem:[%s1680 + $0x30] sm:$0xf]
        %v1694 = vld [vmem:[%s1680 + $0x34] sm:$0xf]
        %v1695 = vld [vmem:[%s1680 + $0x38] sm:$0xf]
        %v1696 = vld [vmem:[%s1680 + $0x3c] sm:$0xf]
        %s1697 = scalar_lea.vmem [#allocation9], 448
        %v1698 = vld [vmem:[%s1697] sm:$0xf]
        %v1699 = vld [vmem:[%s1697 + $0x4] sm:$0xf]
        %v1700 = vld [vmem:[%s1697 + $0x8] sm:$0xf]
        %v1701 = vld [vmem:[%s1697 + $0xc] sm:$0xf]
        %v1702 = vld [vmem:[%s1697 + $0x10] sm:$0xf]
        %v1703 = vld [vmem:[%s1697 + $0x14] sm:$0xf]
        %v1704 = vld [vmem:[%s1697 + $0x18] sm:$0xf]
        %v1705 = vld [vmem:[%s1697 + $0x1c] sm:$0xf]
        %v1706 = vld [vmem:[%s1697 + $0x20] sm:$0xf]
        %v1707 = vld [vmem:[%s1697 + $0x24] sm:$0xf]
        %v1708 = vld [vmem:[%s1697 + $0x28] sm:$0xf]
        %v1709 = vld [vmem:[%s1697 + $0x2c] sm:$0xf]
        %v1710 = vld [vmem:[%s1697 + $0x30] sm:$0xf]
        %v1711 = vld [vmem:[%s1697 + $0x34] sm:$0xf]
        %v1712 = vld [vmem:[%s1697 + $0x38] sm:$0xf]
        %v1713 = vld [vmem:[%s1697 + $0x3c] sm:$0xf]
        %s1714 = scalar_lea.vmem [#allocation9], 512
        %v1715 = vld [vmem:[%s1714] sm:$0xf]
        %v1716 = vld [vmem:[%s1714 + $0x4] sm:$0xf]
        %v1717 = vld [vmem:[%s1714 + $0x8] sm:$0xf]
        %v1718 = vld [vmem:[%s1714 + $0xc] sm:$0xf]
        %v1719 = vld [vmem:[%s1714 + $0x10] sm:$0xf]
        %v1720 = vld [vmem:[%s1714 + $0x14] sm:$0xf]
        %v1721 = vld [vmem:[%s1714 + $0x18] sm:$0xf]
        %v1722 = vld [vmem:[%s1714 + $0x1c] sm:$0xf]
        %v1723 = vld [vmem:[%s1714 + $0x20] sm:$0xf]
        %v1724 = vld [vmem:[%s1714 + $0x24] sm:$0xf]
        %v1725 = vld [vmem:[%s1714 + $0x28] sm:$0xf]
        %v1726 = vld [vmem:[%s1714 + $0x2c] sm:$0xf]
        %v1727 = vld [vmem:[%s1714 + $0x30] sm:$0xf]
        %v1728 = vld [vmem:[%s1714 + $0x34] sm:$0xf]
        %v1729 = vld [vmem:[%s1714 + $0x38] sm:$0xf]
        %v1730 = vld [vmem:[%s1714 + $0x3c] sm:$0xf]
        %s1731 = scalar_lea.vmem %s4, 2
        %v1732 = vld [vmem:[%s1731] sm:$0x1]
        %v1749 = vunpack.c.l.b16 %v1698
        %v1750 = vunpack.c.l.b16 %v1699
        %v1751 = vunpack.c.l.b16 %v1700
        %v1752 = vunpack.c.l.b16 %v1701
        %v1753 = vunpack.c.l.b16 %v1702
        %v1754 = vunpack.c.l.b16 %v1703
        %v1755 = vunpack.c.l.b16 %v1704
        %v1756 = vunpack.c.l.b16 %v1705
        %v1757 = vunpack.c.l.b16 %v1706
        %v1758 = vunpack.c.l.b16 %v1707
        %v1759 = vunpack.c.l.b16 %v1708
        %v1760 = vunpack.c.l.b16 %v1709
        %v1761 = vunpack.c.l.b16 %v1710
        %v1762 = vunpack.c.l.b16 %v1711
        %v1763 = vunpack.c.l.b16 %v1712
        %v1764 = vunpack.c.l.b16 %v1713
        %v1765 = vpack.c.b16 %v1750, %v1749
        %v1766 = vpack.c.b16 %v1752, %v1751
        %v1767 = vpack.c.b16 %v1754, %v1753
        %v1768 = vpack.c.b16 %v1756, %v1755
        %v1769 = vpack.c.b16 %v1758, %v1757
        %v1770 = vpack.c.b16 %v1760, %v1759
        %v1771 = vpack.c.b16 %v1762, %v1761
        %v1772 = vpack.c.b16 %v1764, %v1763
        %1781 = vmatprep.subr.bf16.mxu0 0
        %1782 = vmatpush1.bf16.msra.mxu0 %v1765
        %1783 = vmatprep.subr.bf16.mxu0 0
        %1784 = vmatpush1.bf16.msra.mxu0 %v1766
        %1785 = vmatprep.subr.bf16.mxu0 0
        %1786 = vmatpush1.bf16.msra.mxu0 %v1767
        %1787 = vmatprep.subr.bf16.mxu0 0
        %1788 = vmatpush1.bf16.msra.mxu0 %v1768
        %1789 = vmatprep.subr.bf16.mxu0 0
        %1790 = vmatpush1.bf16.msra.mxu0 %v1769
        %1791 = vmatprep.subr.bf16.mxu0 0
        %1792 = vmatpush1.bf16.msra.mxu0 %v1770
        %1793 = vmatprep.subr.bf16.mxu0 0
        %1794 = vmatpush1.bf16.msra.mxu0 %v1771
        %1795 = vmatprep.subr.bf16.mxu0 0
        %1796 = vmatpush1.bf16.msra.mxu0 %v1772
        %1797 = vmatprep.subr.bf16.mxu0 0
        %1798 = vmatpush1.bf16.msra.mxu0 0
        %1799 = vmatprep.subr.bf16.mxu0 0
        %1800 = vmatpush1.bf16.msra.mxu0 0
        %1801 = vmatprep.subr.bf16.mxu0 0
        %1802 = vmatpush1.bf16.msra.mxu0 0
        %1803 = vmatprep.subr.bf16.mxu0 0
        %1804 = vmatpush1.bf16.msra.mxu0 0
        %1805 = vmatprep.subr.bf16.mxu0 0
        %1806 = vmatpush1.bf16.msra.mxu0 0
        %1807 = vmatprep.subr.bf16.mxu0 0
        %1808 = vmatpush1.bf16.msra.mxu0 0
        %1809 = vmatprep.subr.bf16.mxu0 0
        %1810 = vmatpush1.bf16.msra.mxu0 0
        %1811 = vmatprep.subr.bf16.mxu0 0
        %1812 = vmatpush1.bf16.msra.mxu0 0
        %1813 = vmatprep.mubr.bf16.mxu0 0
        %1814 = vmatmul.mubr.bf16.gmra.mrb[0].mxu0 %v1678
        %v1815 = vpop.f32.mrb[0].mxu0
        %v1816 = vpop.f32.mrb[0].mxu0
        %v1817 = vpop.f32.mrb[0].mxu0
        %v1818 = vadd.f32 0.0, %v1817
        %v1819 = vpop.f32.mrb[0].mxu0
        %1820 = vmatprep.mubr.bf16.mxu0 0
        %1821 = vmatmul.mubr.bf16.gmra.mrb[0].mxu0 %v1679
        %v1822 = vpop.f32.mrb[0].mxu0
        %v1823 = vadd.f32 0.0, %v1822
        %v1824 = vpop.f32.mrb[0].mxu0
        %v1825 = vpop.f32.mrb[0].mxu0
        %v1826 = vpop.f32.mrb[0].mxu0
        %1827 = vdwg.mxu0
        %v1844 = vunpack.c.l.b16 %v1681
        %v1845 = vunpack.c.l.b16 %v1682
        %v1846 = vunpack.c.l.b16 %v1683
        %v1847 = vunpack.c.l.b16 %v1684
        %v1848 = vunpack.c.l.b16 %v1685
        %v1849 = vunpack.c.l.b16 %v1686
        %v1850 = vunpack.c.l.b16 %v1687
        %v1851 = vunpack.c.l.b16 %v1688
        %v1852 = vunpack.c.l.b16 %v1689
        %v1853 = vunpack.c.l.b16 %v1690
        %v1854 = vunpack.c.l.b16 %v1691
        %v1855 = vunpack.c.l.b16 %v1692
        %v1856 = vunpack.c.l.b16 %v1693
        %v1857 = vunpack.c.l.b16 %v1694
        %v1858 = vunpack.c.l.b16 %v1695
        %v1859 = vunpack.c.l.b16 %v1696
        %v1860 = vpack.c.b16 %v1845, %v1844
        %v1861 = vpack.c.b16 %v1847, %v1846
        %v1862 = vpack.c.b16 %v1849, %v1848
        %v1863 = vpack.c.b16 %v1851, %v1850
        %v1864 = vpack.c.b16 %v1853, %v1852
        %v1865 = vpack.c.b16 %v1855, %v1854
        %v1866 = vpack.c.b16 %v1857, %v1856
        %v1867 = vpack.c.b16 %v1859, %v1858
        %1876 = vmatprep.subr.bf16.mxu0 0
        %1877 = vmatpush1.bf16.msra.mxu0 %v1860
        %1878 = vmatprep.subr.bf16.mxu0 0
        %1879 = vmatpush1.bf16.msra.mxu0 %v1861
        %1880 = vmatprep.subr.bf16.mxu0 0
        %1881 = vmatpush1.bf16.msra.mxu0 %v1862
        %1882 = vmatprep.subr.bf16.mxu0 0
        %1883 = vmatpush1.bf16.msra.mxu0 %v1863
        %1884 = vmatprep.subr.bf16.mxu0 0
        %1885 = vmatpush1.bf16.msra.mxu0 %v1864
        %1886 = vmatprep.subr.bf16.mxu0 0
        %1887 = vmatpush1.bf16.msra.mxu0 %v1865
        %1888 = vmatprep.subr.bf16.mxu0 0
        %1889 = vmatpush1.bf16.msra.mxu0 %v1866
        %1890 = vmatprep.subr.bf16.mxu0 0
        %1891 = vmatpush1.bf16.msra.mxu0 %v1867
        %1892 = vmatprep.subr.bf16.mxu0 0
        %1893 = vmatpush1.bf16.msra.mxu0 0
        %1894 = vmatprep.subr.bf16.mxu0 0
        %1895 = vmatpush1.bf16.msra.mxu0 0
        %1896 = vmatprep.subr.bf16.mxu0 0
        %1897 = vmatpush1.bf16.msra.mxu0 0
        %1898 = vmatprep.subr.bf16.mxu0 0
        %1899 = vmatpush1.bf16.msra.mxu0 0
        %1900 = vmatprep.subr.bf16.mxu0 0
        %1901 = vmatpush1.bf16.msra.mxu0 0
        %1902 = vmatprep.subr.bf16.mxu0 0
        %1903 = vmatpush1.bf16.msra.mxu0 0
        %1904 = vmatprep.subr.bf16.mxu0 0
        %1905 = vmatpush1.bf16.msra.mxu0 0
        %1906 = vmatprep.subr.bf16.mxu0 0
        %1907 = vmatpush1.bf16.msra.mxu0 0
        %1908 = vmatprep.mubr.bf16.mxu0 0
        %1909 = vmatmul.mubr.bf16.gmra.mrb[0].mxu0 %v1678
        %v1910 = vpop.f32.mrb[0].mxu0
        %v1911 = vadd.f32 0.0, %v1910
        %v1912 = vpop.f32.mrb[0].mxu0
        %v1913 = vpop.f32.mrb[0].mxu0
        %v1914 = vadd.f32 0.0, %v1913
        %v1915 = vpop.f32.mrb[0].mxu0
        %1916 = vmatprep.mubr.bf16.mxu0 0
        %1917 = vmatmul.mubr.bf16.gmra.mrb[0].mxu0 %v1679
        %v1918 = vpop.f32.mrb[0].mxu0
        %v1919 = vadd.f32 0.0, %v1918
        %v1920 = vpop.f32.mrb[0].mxu0
        %v1921 = vpop.f32.mrb[0].mxu0
        %v1922 = vpop.f32.mrb[0].mxu0
        %1923 = vdwg.mxu0
        %v1927 = vrot.slane %v1911, 7
        %v1928 = vrot.slane %v1914, 7
        %v1929 = vsel %vm519, %v1927, %v1928
        %v1930 = vrot.slane %v1919, 7
        %v1931 = vsel %vm519, %v1928, %v1930
        %v1934 = vadd.f32 %v1818, %v1929
        %v1935 = vadd.f32 %v1823, %v1931
        %v1952 = vunpack.c.l.b16 %v1715
        %v1953 = vunpack.c.l.b16 %v1716
        %v1954 = vunpack.c.l.b16 %v1717
        %v1955 = vunpack.c.l.b16 %v1718
        %v1956 = vunpack.c.l.b16 %v1719
        %v1957 = vunpack.c.l.b16 %v1720
        %v1958 = vunpack.c.l.b16 %v1721
        %v1959 = vunpack.c.l.b16 %v1722
        %v1960 = vunpack.c.l.b16 %v1723
        %v1961 = vunpack.c.l.b16 %v1724
        %v1962 = vunpack.c.l.b16 %v1725
        %v1963 = vunpack.c.l.b16 %v1726
        %v1964 = vunpack.c.l.b16 %v1727
        %v1965 = vunpack.c.l.b16 %v1728
        %v1966 = vunpack.c.l.b16 %v1729
        %v1967 = vunpack.c.l.b16 %v1730
        %v1968 = vpack.c.b16 %v1953, %v1952
        %v1969 = vpack.c.b16 %v1955, %v1954
        %v1970 = vpack.c.b16 %v1957, %v1956
        %v1971 = vpack.c.b16 %v1959, %v1958
        %v1972 = vpack.c.b16 %v1961, %v1960
        %v1973 = vpack.c.b16 %v1963, %v1962
        %v1974 = vpack.c.b16 %v1965, %v1964
        %v1975 = vpack.c.b16 %v1967, %v1966
        %1984 = vmatprep.subr.bf16.mxu0 0
        %1985 = vmatpush1.bf16.msra.mxu0 %v1968
        %1986 = vmatprep.subr.bf16.mxu0 0
        %1987 = vmatpush1.bf16.msra.mxu0 %v1969
        %1988 = vmatprep.subr.bf16.mxu0 0
        %1989 = vmatpush1.bf16.msra.mxu0 %v1970
        %1990 = vmatprep.subr.bf16.mxu0 0
        %1991 = vmatpush1.bf16.msra.mxu0 %v1971
        %1992 = vmatprep.subr.bf16.mxu0 0
        %1993 = vmatpush1.bf16.msra.mxu0 %v1972
        %1994 = vmatprep.subr.bf16.mxu0 0
        %1995 = vmatpush1.bf16.msra.mxu0 %v1973
        %1996 = vmatprep.subr.bf16.mxu0 0
        %1997 = vmatpush1.bf16.msra.mxu0 %v1974
        %1998 = vmatprep.subr.bf16.mxu0 0
        %1999 = vmatpush1.bf16.msra.mxu0 %v1975
        %2000 = vmatprep.subr.bf16.mxu0 0
        %2001 = vmatpush1.bf16.msra.mxu0 0
        %2002 = vmatprep.subr.bf16.mxu0 0
        %2003 = vmatpush1.bf16.msra.mxu0 0
        %2004 = vmatprep.subr.bf16.mxu0 0
        %2005 = vmatpush1.bf16.msra.mxu0 0
        %2006 = vmatprep.subr.bf16.mxu0 0
        %2007 = vmatpush1.bf16.msra.mxu0 0
        %2008 = vmatprep.subr.bf16.mxu0 0
        %2009 = vmatpush1.bf16.msra.mxu0 0
        %2010 = vmatprep.subr.bf16.mxu0 0
        %2011 = vmatpush1.bf16.msra.mxu0 0
        %2012 = vmatprep.subr.bf16.mxu0 0
        %2013 = vmatpush1.bf16.msra.mxu0 0
        %2014 = vmatprep.subr.bf16.mxu0 0
        %2015 = vmatpush1.bf16.msra.mxu0 0
        %2016 = vmatprep.mubr.bf16.mxu0 0
        %2017 = vmatmul.mubr.bf16.gmra.mrb[0].mxu0 %v1678
        %v2018 = vpop.f32.mrb[0].mxu0
        %v2019 = vpop.f32.mrb[0].mxu0
        %v2020 = vpop.f32.mrb[0].mxu0
        %v2021 = vadd.f32 0.0, %v2020
        %v2022 = vpop.f32.mrb[0].mxu0
        %2023 = vmatprep.mubr.bf16.mxu0 0
        %2024 = vmatmul.mubr.bf16.gmra.mrb[0].mxu0 %v1679
        %v2025 = vpop.f32.mrb[0].mxu0
        %v2026 = vadd.f32 0.0, %v2025
        %v2027 = vpop.f32.mrb[0].mxu0
        %v2028 = vpop.f32.mrb[0].mxu0
        %v2029 = vadd.f32 0.0, %v2028
        %v2030 = vpop.f32.mrb[0].mxu0
        %2031 = vdwg.mxu0
        %v2035 = vrot.slane %v2021, 1
        %v2036 = vrot.slane %v2026, 1
        %v2037 = vsel %vm636, %v2035, %v2036
        %v2038 = vrot.slane %v2029, 1
        %v2039 = vsel %vm636, %v2036, %v2038
        %v2042 = vadd.f32 %v1934, %v2037
        %v2043 = vadd.f32 %v1935, %v2039
        %v2045 = vlaneseq
        %v2046 = vshrl.u32 %v2045, 7
        %v2047 = vsub.s32 0, %v2046
        %v2048 = vrot.slane %v1732, %v2047
        %v2050 = vadd.f32 %v2042, %v2048
        %v2051 = vadd.f32 %v2043, %v2048
        %2052 = vst [vmem:[%s220] sm:$0xff] %v2050
        %2053 = vst [vmem:[%s220 + $0x8] sm:$0xff] %v2051
        %s2054 = sand.u32 %s127, 1
        %s2055 = scalar_lea.sflag [#allocation8], %s2054
        %s2056 = sand.u32 %s127, 1
        %s2057 = smul.addr %s2056, 16
        %s2058 = scalar_lea.vmem [#allocation11], %s2057
        // Predicated region
        $region49: #{tpu_custom_call.1} parent=35 // pred_check
          %p2059 = pneg %p137
        $region50: #{tpu_custom_call.1} parent=35 // pred_check_branch
          %2061 = sbr.rel (%p2059) target = $region52
        $region51: #{tpu_custom_call.1} parent=35 // pred_region
          %s2062 = smul.u32 2, %s26
          %s2064 = ssub.s32 256, 256
          %2065 = vsyncadd %s2055, %s2064
          %s2066 = smul.addr %s25, 2
          %s2067 = sadd.s32 %s2062, %s2066
          %s2068 = smul.addr %s2067, 128
          %s2069 = scalar_lea.hbm %s5, %s2068
          %s2070 = sshll.u32 %s2058, 4
          %s2071 = int_to_ptr.vmem [resolvable:$true] %s2070
          %2076 = dma.vmem_to_hbm [thread:$0]  %s2071, 256, %s2069, %s2055, 128, 128, 8
        $region52: #{tpu_custom_call.1} parent=35 // pred_fallthru
          _
      $region36: #{tpu_custom_call.1} parent=5 // pred_fallthru
        _
      %p2077 = scmp.le.s32.totalorder 2, %s16
      // Predicated region
      $region53: #{tpu_custom_call.1} parent=5 // pred_check
        %p2078 = pneg %p2077
      $region54: #{tpu_custom_call.1} parent=5 // pred_check_branch
        %2080 = sbr.rel (%p2078) target = $region56
      $region55: #{tpu_custom_call.1} parent=5 // pred_region
        %s2081 = ssub.s32 %s16, 2
        // Predicated region
        $region57: #{tpu_custom_call.1} parent=55 // pred_check
          %p2082 = pneg %p143
        $region58: #{tpu_custom_call.1} parent=55 // pred_check_branch
          %2084 = sbr.rel (%p2082) target = $region60
        $region59: #{tpu_custom_call.1} parent=55 // pred_region
          %s2085 = sand.u32 %s128, 1
          %s2086 = scalar_lea.sflag [#allocation8], %s2085
          %s2087 = sand.u32 %s128, 1
          %s2088 = smul.addr %s2087, 16
          %s2089 = scalar_lea.vmem [#allocation11], %s2088
          %2090 = dma.done %s2086, 256
        $region60: #{tpu_custom_call.1} parent=55 // pred_fallthru
          _
      $region56: #{tpu_custom_call.1} parent=5 // pred_fallthru
        _
    $region6: #{tpu_custom_call.1} parent=1 // loop_footer
      %s20 = sadd.s32 1, %s16
    $region7: #{tpu_custom_call.1} parent=1 // loop_footer_branch
      %15 = sbr.rel target = $region3
    $region8: #{tpu_custom_call.1} parent=1 // loop_exit
      _
    %2091 = vsyncpa [#allocation7], 1
    %s2092 = scalar_lea.sflag [#allocation7], 1
    %2093 = vsyncpa %s2092, 1
    %2094 = vsyncpa [#allocation10], 1
    %2095 = vsyncpa [#allocation8], 1
    %s2096 = scalar_lea.sflag [#allocation8], 1
    %2097 = vsyncpa %s2096, 1
  %2098 = vsyncmov [#allocation5]
  %s2099 = vpop.sfrf %2098
  %p2100 = scmp.eq.s32.totalorder %s2099, 0
  %p2101 = pneg %p2100
  %2103 = shalt.err (%p2101)

</llo_original>
